<compile_context>
chip_gen: v6e
topology: v6e:2x2x1
jax: 0.10.0
libtpu: 0.0.40
codegen_flags: <defaults>
</compile_context>

<pallas_src>
import functools
import math

import jax
import jax.numpy as jnp
import numpy as np
from jax.experimental import pallas as pl
from jax.experimental.pallas import tpu as pltpu


def _mha_kernel(xq_ref, xkv_ref, wq_ref, bq_ref, wkv_ref, bkv_ref,
                wfc_ref, bfc_ref, attn_ref, out_ref,
                q_sc, k_sc, v_sc, ctx_sc, *, num_heads, head_dim, d_model):
    """One (batch, query-tile) step.

    xq_ref  : (1, TQ, D)  query rows of this tile
    xkv_ref : (1, S, D)   full sequence (for K/V projection, only used at qi==0)
    wq_ref  : (D, D)      bq_ref : (1, D)
    wkv_ref : (D, 2D)     bkv_ref: (1, 2D)     fused [K | V] projection
    wfc_ref : (D, D)      bfc_ref: (1, D)
    attn_ref: (1, H, TQ, S)   out_ref: (1, TQ, D)
    q_sc    : (H, TQ, Dh)  k_sc/v_sc: (H, S, Dh)  ctx_sc: (TQ, D)   VMEM scratch
    """
    H, Dh, D = num_heads, head_dim, d_model
    scale = 1.0 / math.sqrt(Dh)

    # ---- K/V projection: once per batch element, kept resident across q-tiles.
    @pl.when(pl.program_id(1) == 0)
    def _project_kv():
        xkv = xkv_ref[0]                                              # (S, D)
        kv = jnp.dot(xkv, wkv_ref[...],
                     preferred_element_type=jnp.float32) + bkv_ref[...]   # (S, 2D)
        for h in range(H):                       # head-major relayout via scratch
            k_sc[h] = kv[:, h * Dh:(h + 1) * Dh]
            v_sc[h] = kv[:, D + h * Dh:D + (h + 1) * Dh]

    # ---- Q projection for this query tile.
    xq = xq_ref[0]                                                    # (TQ, D)
    q = jnp.dot(xq, wq_ref[...], preferred_element_type=jnp.float32) + bq_ref[...]
    for h in range(H):
        q_sc[h] = q[:, h * Dh:(h + 1) * Dh]

    qh = q_sc[...]                                                    # (H, TQ, Dh)
    kh = k_sc[...]                                                    # (H, S, Dh)
    vh = v_sc[...]                                                    # (H, S, Dh)

    # ---- scores + softmax, batched over heads (no explicit transpose).
    s = jnp.einsum("hqd,hkd->hqk", qh, kh,
                   preferred_element_type=jnp.float32) * scale        # (H, TQ, S)
    s = s - jnp.max(s, axis=-1, keepdims=True)
    e = jnp.exp(s)
    p = e * pl.reciprocal(jnp.sum(e, axis=-1, keepdims=True), approx=True)
    attn_ref[0] = p.astype(attn_ref.dtype)

    # ---- attention @ V, written head-by-head into the (TQ, D) context slab.
    ctx = jnp.einsum("hqk,hkd->hqd", p, vh,
                     preferred_element_type=jnp.float32)              # (H, TQ, Dh)
    for h in range(H):
        ctx_sc[:, h * Dh:(h + 1) * Dh] = ctx[h]

    # ---- output projection (dropout p=0.5 -> identity in eval mode).
    out = jnp.dot(ctx_sc[...], wfc_ref[...],
                  preferred_element_type=jnp.float32) + bfc_ref[...]
    out_ref[0] = out.astype(out_ref.dtype)


def _mha_pallas(x, params, *, num_heads, tq, single_buffer_weights):
    B, S, D = x.shape
    assert D % num_heads == 0, "d_model must be divisible by num_heads"
    Dh = D // num_heads

    if tq is None:
        # 128-row query tiles (VMEM-safe on v7x); fall back to full S when small/ragged.
        tq = 128 if (S > 128 and S % 128 == 0) else S
    # TODO(synk): pad ragged sequence lengths to a multiple of the query tile.
    assert S % tq == 0, "seq_len must be a multiple of the query tile"
    nq = S // tq

    # Fuse the K and V projections into one (D, 2D) weight / (1, 2D) bias block.
    wkv = jnp.concatenate([params["wk"], params["wv"]], axis=1)
    bkv = jnp.concatenate([params["bk"], params["bv"]], axis=1)

    def const_spec(shape):
        idx = lambda b, qi: (0,) * len(shape)
        if single_buffer_weights:
            # Grid-invariant block: double buffering is pure VMEM waste.
            return pl.BlockSpec(shape, idx, pipeline_mode=pl.Buffered(1))
        return pl.BlockSpec(shape, idx)

    kernel = functools.partial(_mha_kernel, num_heads=num_heads,
                               head_dim=Dh, d_model=D)

    flops = B * (2 * S * D * 3 * D        # QKV projections
                 + 4 * S * S * D          # scores + attention @ V
                 + 2 * S * D * D)         # output projection
    bytes_accessed = 4 * (B * S * D + 4 * D * D + 4 * D
                          + B * num_heads * S * S + B * S * D)
    cost = pl.CostEstimate(flops=flops,
                           transcendentals=B * num_heads * S * S,
                           bytes_accessed=bytes_accessed)

    attn, out = pl.pallas_call(
        kernel,
        out_shape=(
            jax.ShapeDtypeStruct((B, num_heads, S, S), jnp.float32),
            jax.ShapeDtypeStruct((B, S, D), jnp.float32),
        ),
        grid_spec=pltpu.PrefetchScalarGridSpec(
            num_scalar_prefetch=0,
            grid=(B, nq),
            in_specs=[
                pl.BlockSpec((1, tq, D), lambda b, qi: (b, qi, 0)),   # x: query rows
                pl.BlockSpec((1, S, D), lambda b, qi: (b, 0, 0)),     # x: full seq (K/V)
                const_spec((D, D)), const_spec((1, D)),               # Wq, bq
                const_spec((D, 2 * D)), const_spec((1, 2 * D)),       # W[k|v], b[k|v]
                const_spec((D, D)), const_spec((1, D)),               # Wfc, bfc
            ],
            out_specs=[
                pl.BlockSpec((1, num_heads, tq, S), lambda b, qi: (b, 0, qi, 0)),
                pl.BlockSpec((1, tq, D), lambda b, qi: (b, qi, 0)),
            ],
            scratch_shapes=[
                pltpu.VMEM((num_heads, tq, Dh), jnp.float32),   # q, head-major
                pltpu.VMEM((num_heads, S, Dh), jnp.float32),    # k, resident across q-tiles
                pltpu.VMEM((num_heads, S, Dh), jnp.float32),    # v, resident across q-tiles
                pltpu.VMEM((tq, D), jnp.float32),               # context slab
            ],
        ),
        compiler_params=pltpu.CompilerParams(
            # batch axis split across cores; query axis carries resident K/V scratch
            dimension_semantics=("parallel", "arbitrary"),
            vmem_limit_bytes=48 * 1024 * 1024,
        ),
        cost_estimate=cost,
    )(x, x, params["wq"], params["bq"], wkv, bkv, params["wfc"], params["bfc"])
    return attn, out


def multi_head_attention(x, params, *, num_heads, tq=None):
    """x: (B, S, D) f32. Returns (attention_weights, output) like the torch module."""
    try:
        return _mha_pallas(x, params, num_heads=num_heads, tq=tq,
                           single_buffer_weights=True)
    except Exception:
        # pipeline_mode=pl.Buffered(1) unsupported on this JAX/Mosaic version:
        # fall back to default double-buffered weight blocks (correct, more VMEM).
        return _mha_pallas(x, params, num_heads=num_heads, tq=tq,
                           single_buffer_weights=False)


def init_params(key, d_model):
    """PyTorch-Linear-style init U(-1/sqrt(in), 1/sqrt(in)); weights stored (in, out)."""
    bound = 1.0 / math.sqrt(d_model)
    keys = jax.random.split(key, 8)

    def u(k, shape):
        return jax.random.uniform(k, shape, jnp.float32, -bound, bound)

    return {
        "wq": u(keys[0], (d_model, d_model)), "bq": u(keys[1], (1, d_model)),
        "wk": u(keys[2], (d_model, d_model)), "bk": u(keys[3], (1, d_model)),
        "wv": u(keys[4], (d_model, d_model)), "bv": u(keys[5], (1, d_model)),
        "wfc": u(keys[6], (d_model, d_model)), "bfc": u(keys[7], (1, d_model)),
    }


def reference_mha(x, params, *, num_heads):
    """Pure-JAX reference mirroring the PyTorch forward (mask=None, eval dropout)."""
    B, S, D = x.shape
    Dh = D // num_heads
    q = x @ params["wq"] + params["bq"]
    k = x @ params["wk"] + params["bk"]
    v = x @ params["wv"] + params["bv"]
    q = q.reshape(B, S, num_heads, Dh).transpose(0, 2, 1, 3)
    k = k.reshape(B, S, num_heads, Dh).transpose(0, 2, 1, 3)
    v = v.reshape(B, S, num_heads, Dh).transpose(0, 2, 1, 3)
    scores = jnp.einsum("bhqd,bhkd->bhqk", q, k) / math.sqrt(Dh)
    attn = jax.nn.softmax(scores, axis=-1)
    out = jnp.einsum("bhqk,bhkd->bhqd", attn, v)
    out = out.transpose(0, 2, 1, 3).reshape(B, S, D)
    out = out @ params["wfc"] + params["bfc"]
    return attn, out


if __name__ == "__main__":
    def check(batch, seq_len, d_model, num_heads):
        key = jax.random.PRNGKey(0)
        kx, kp = jax.random.split(key)
        x = jax.random.normal(kx, (batch, seq_len, d_model), dtype=jnp.float32)
        params = init_params(kp, d_model)

        attn, out = multi_head_attention(x, params, num_heads=num_heads)
        jax.block_until_ready((attn, out))

        attn_ref, out_ref = reference_mha(x, params, num_heads=num_heads)
        # Tolerance accounts for the EUP approximate-reciprocal softmax denominator.
        np.testing.assert_allclose(np.asarray(attn), np.asarray(attn_ref),
                                   atol=5e-3, rtol=5e-3)
        np.testing.assert_allclose(np.asarray(out), np.asarray(out_ref),
                                   atol=5e-3, rtol=5e-3)

    # Small shapes consistent with the module (d_model divisible by num_heads).
    check(batch=2, seq_len=8, d_model=32, num_heads=2)
    # Exercises the query-tile grid axis (2 tiles of 128) + resident K/V scratch path.
    check(batch=2, seq_len=256, d_model=64, num_heads=2)

    print("KERNEL_OK")
</pallas_src>

<mosaic_0001>
module attributes {stable_mosaic.version = 11 : i64} {
  func.func @_mha_kernel(%arg0: i32, %arg1: i32, %arg2: memref<1x8x32xf32, #tpu.memory_space<vmem>>, %arg3: memref<1x8x32xf32, #tpu.memory_space<vmem>>, %arg4: memref<32x32xf32, #tpu.memory_space<vmem>>, %arg5: memref<1x32xf32, #tpu.memory_space<vmem>>, %arg6: memref<32x64xf32, #tpu.memory_space<vmem>>, %arg7: memref<1x64xf32, #tpu.memory_space<vmem>>, %arg8: memref<32x32xf32, #tpu.memory_space<vmem>>, %arg9: memref<1x32xf32, #tpu.memory_space<vmem>>, %arg10: memref<1x2x8x8xf32, #tpu.memory_space<vmem>>, %arg11: memref<1x8x32xf32, #tpu.memory_space<vmem>>, %arg12: memref<2x8x16xf32, #tpu.memory_space<vmem>>, %arg13: memref<2x8x16xf32, #tpu.memory_space<vmem>>, %arg14: memref<2x8x16xf32, #tpu.memory_space<vmem>>, %arg15: memref<8x32xf32, #tpu.memory_space<vmem>>) attributes {dimension_semantics = [#tpu.dimension_semantics<parallel>, #tpu.dimension_semantics<arbitrary>], iteration_bounds = array<i64: 2, 1>, scalar_prefetch = 0 : i64, scratch_operands = 4 : i64, tpu.core_type = #tpu.core_type<tc>, window_params = [{transform_indices = @transform_0, window_bounds = array<i64: 1, 8, 32>}, {transform_indices = @transform_1, window_bounds = array<i64: 1, 8, 32>}, {pipeline_mode = #tpu.pipeline_mode<synchronous>, transform_indices = @transform_2, window_bounds = array<i64: 32, 32>}, {pipeline_mode = #tpu.pipeline_mode<synchronous>, transform_indices = @transform_3, window_bounds = array<i64: 1, 32>}, {pipeline_mode = #tpu.pipeline_mode<synchronous>, transform_indices = @transform_4, window_bounds = array<i64: 32, 64>}, {pipeline_mode = #tpu.pipeline_mode<synchronous>, transform_indices = @transform_5, window_bounds = array<i64: 1, 64>}, {pipeline_mode = #tpu.pipeline_mode<synchronous>, transform_indices = @transform_6, window_bounds = array<i64: 32, 32>}, {pipeline_mode = #tpu.pipeline_mode<synchronous>, transform_indices = @transform_7, window_bounds = array<i64: 1, 32>}, {transform_indices = @transform_8, window_bounds = array<i64: 1, 2, 8, 8>}, {transform_indices = @transform_9, window_bounds = array<i64: 1, 8, 32>}]} {
    %c0_i32 = arith.constant 0 : i32
    %0 = arith.cmpi eq, %arg1, %c0_i32 : i32
    %1 = arith.extui %0 : i1 to i32
    %c0_i32_0 = arith.constant 0 : i32
    %2 = arith.cmpi ne, %1, %c0_i32_0 : i32
    scf.if %2 {
      %c0_43 = arith.constant 0 : index
      %c0_44 = arith.constant 0 : index
      %c0_45 = arith.constant 0 : index
      %53 = vector.load %arg3[%c0_43, %c0_44, %c0_45] : memref<1x8x32xf32, #tpu.memory_space<vmem>>, vector<1x8x32xf32>
      %54 = vector.shape_cast %53 : vector<1x8x32xf32> to vector<8x32xf32>
      %c0_46 = arith.constant 0 : index
      %c0_47 = arith.constant 0 : index
      %55 = vector.load %arg6[%c0_46, %c0_47] : memref<32x64xf32, #tpu.memory_space<vmem>>, vector<32x64xf32>
      %cst_48 = arith.constant dense<0.000000e+00> : vector<8x64xf32>
      %56 = tpu.matmul %54, %55, %cst_48 {dimension_numbers = #tpu.dot_dimension_numbers<[1], [0], [0], [1], [0, 0, 1, 1], [], []>} : vector<8x32xf32>, vector<32x64xf32>, vector<8x64xf32> -> vector<8x64xf32>
      %c0_49 = arith.constant 0 : index
      %c0_50 = arith.constant 0 : index
      %57 = vector.load %arg7[%c0_49, %c0_50] : memref<1x64xf32, #tpu.memory_space<vmem>>, vector<1x64xf32>
      %58 = vector.broadcast %57 : vector<1x64xf32> to vector<8x64xf32>
      %59 = arith.addf %56, %58 : vector<8x64xf32>
      %60 = vector.extract_strided_slice %59 {offsets = [0, 0], sizes = [8, 16], strides = [1, 1]} : vector<8x64xf32> to vector<8x16xf32>
      %c0_51 = arith.constant 0 : index
      %c0_52 = arith.constant 0 : index
      %c0_53 = arith.constant 0 : index
      %61 = vector.load %arg13[%c0_51, %c0_52, %c0_53] : memref<2x8x16xf32, #tpu.memory_space<vmem>>, vector<1x8x16xf32>
      %62 = vector.shape_cast %61 : vector<1x8x16xf32> to vector<8x16xf32>
      %63 = vector.shape_cast %60 : vector<8x16xf32> to vector<1x8x16xf32>
      tpu.vector_store %arg13[%c0_51, %c0_52, %c0_53], %63 {strides = array<i32>} : memref<2x8x16xf32, #tpu.memory_space<vmem>>, vector<1x8x16xf32>,
      %64 = vector.extract_strided_slice %59 {offsets = [0, 32], sizes = [8, 16], strides = [1, 1]} : vector<8x64xf32> to vector<8x16xf32>
      %c0_54 = arith.constant 0 : index
      %c0_55 = arith.constant 0 : index
      %c0_56 = arith.constant 0 : index
      %65 = vector.load %arg14[%c0_54, %c0_55, %c0_56] : memref<2x8x16xf32, #tpu.memory_space<vmem>>, vector<1x8x16xf32>
      %66 = vector.shape_cast %65 : vector<1x8x16xf32> to vector<8x16xf32>
      %67 = vector.shape_cast %64 : vector<8x16xf32> to vector<1x8x16xf32>
      tpu.vector_store %arg14[%c0_54, %c0_55, %c0_56], %67 {strides = array<i32>} : memref<2x8x16xf32, #tpu.memory_space<vmem>>, vector<1x8x16xf32>,
      %68 = vector.extract_strided_slice %59 {offsets = [0, 16], sizes = [8, 16], strides = [1, 1]} : vector<8x64xf32> to vector<8x16xf32>
      %c1_57 = arith.constant 1 : index
      %c0_58 = arith.constant 0 : index
      %c0_59 = arith.constant 0 : index
      %69 = vector.load %arg13[%c1_57, %c0_58, %c0_59] : memref<2x8x16xf32, #tpu.memory_space<vmem>>, vector<1x8x16xf32>
      %70 = vector.shape_cast %69 : vector<1x8x16xf32> to vector<8x16xf32>
      %71 = vector.shape_cast %68 : vector<8x16xf32> to vector<1x8x16xf32>
      tpu.vector_store %arg13[%c1_57, %c0_58, %c0_59], %71 {strides = array<i32>} : memref<2x8x16xf32, #tpu.memory_space<vmem>>, vector<1x8x16xf32>,
      %72 = vector.extract_strided_slice %59 {offsets = [0, 48], sizes = [8, 16], strides = [1, 1]} : vector<8x64xf32> to vector<8x16xf32>
      %c1_60 = arith.constant 1 : index
      %c0_61 = arith.constant 0 : index
      %c0_62 = arith.constant 0 : index
      %73 = vector.load %arg14[%c1_60, %c0_61, %c0_62] : memref<2x8x16xf32, #tpu.memory_space<vmem>>, vector<1x8x16xf32>
      %74 = vector.shape_cast %73 : vector<1x8x16xf32> to vector<8x16xf32>
      %75 = vector.shape_cast %72 : vector<8x16xf32> to vector<1x8x16xf32>
      tpu.vector_store %arg14[%c1_60, %c0_61, %c0_62], %75 {strides = array<i32>} : memref<2x8x16xf32, #tpu.memory_space<vmem>>, vector<1x8x16xf32>,
    } else {
    }
    %c0 = arith.constant 0 : index
    %c0_1 = arith.constant 0 : index
    %c0_2 = arith.constant 0 : index
    %3 = vector.load %arg2[%c0, %c0_1, %c0_2] : memref<1x8x32xf32, #tpu.memory_space<vmem>>, vector<1x8x32xf32>
    %4 = vector.shape_cast %3 : vector<1x8x32xf32> to vector<8x32xf32>
    %c0_3 = arith.constant 0 : index
    %c0_4 = arith.constant 0 : index
    %5 = vector.load %arg4[%c0_3, %c0_4] : memref<32x32xf32, #tpu.memory_space<vmem>>, vector<32x32xf32>
    %cst = arith.constant dense<0.000000e+00> : vector<8x32xf32>
    %6 = tpu.matmul %4, %5, %cst {dimension_numbers = #tpu.dot_dimension_numbers<[1], [0], [0], [1], [0, 0, 1, 1], [], []>} : vector<8x32xf32>, vector<32x32xf32>, vector<8x32xf32> -> vector<8x32xf32>
    %c0_5 = arith.constant 0 : index
    %c0_6 = arith.constant 0 : index
    %7 = vector.load %arg5[%c0_5, %c0_6] : memref<1x32xf32, #tpu.memory_space<vmem>>, vector<1x32xf32>
    %8 = vector.broadcast %7 : vector<1x32xf32> to vector<8x32xf32>
    %9 = arith.addf %6, %8 : vector<8x32xf32>
    %10 = vector.extract_strided_slice %9 {offsets = [0, 0], sizes = [8, 16], strides = [1, 1]} : vector<8x32xf32> to vector<8x16xf32>
    %c0_7 = arith.constant 0 : index
    %c0_8 = arith.constant 0 : index
    %c0_9 = arith.constant 0 : index
    %11 = vector.load %arg12[%c0_7, %c0_8, %c0_9] : memref<2x8x16xf32, #tpu.memory_space<vmem>>, vector<1x8x16xf32>
    %12 = vector.shape_cast %11 : vector<1x8x16xf32> to vector<8x16xf32>
    %13 = vector.shape_cast %10 : vector<8x16xf32> to vector<1x8x16xf32>
    tpu.vector_store %arg12[%c0_7, %c0_8, %c0_9], %13 {strides = array<i32>} : memref<2x8x16xf32, #tpu.memory_space<vmem>>, vector<1x8x16xf32>,
    %14 = vector.extract_strided_slice %9 {offsets = [0, 16], sizes = [8, 16], strides = [1, 1]} : vector<8x32xf32> to vector<8x16xf32>
    %c1 = arith.constant 1 : index
    %c0_10 = arith.constant 0 : index
    %c0_11 = arith.constant 0 : index
    %15 = vector.load %arg12[%c1, %c0_10, %c0_11] : memref<2x8x16xf32, #tpu.memory_space<vmem>>, vector<1x8x16xf32>
    %16 = vector.shape_cast %15 : vector<1x8x16xf32> to vector<8x16xf32>
    %17 = vector.shape_cast %14 : vector<8x16xf32> to vector<1x8x16xf32>
    tpu.vector_store %arg12[%c1, %c0_10, %c0_11], %17 {strides = array<i32>} : memref<2x8x16xf32, #tpu.memory_space<vmem>>, vector<1x8x16xf32>,
    %c0_12 = arith.constant 0 : index
    %c0_13 = arith.constant 0 : index
    %c0_14 = arith.constant 0 : index
    %18 = vector.load %arg12[%c0_12, %c0_13, %c0_14] : memref<2x8x16xf32, #tpu.memory_space<vmem>>, vector<2x8x16xf32>
    %c0_15 = arith.constant 0 : index
    %c0_16 = arith.constant 0 : index
    %c0_17 = arith.constant 0 : index
    %19 = vector.load %arg13[%c0_15, %c0_16, %c0_17] : memref<2x8x16xf32, #tpu.memory_space<vmem>>, vector<2x8x16xf32>
    %c0_18 = arith.constant 0 : index
    %c0_19 = arith.constant 0 : index
    %c0_20 = arith.constant 0 : index
    %20 = vector.load %arg14[%c0_18, %c0_19, %c0_20] : memref<2x8x16xf32, #tpu.memory_space<vmem>>, vector<2x8x16xf32>
    "tpu.trace_start"() <{level = 10 : i32, message = "hqd,hkd->hqk"}> : () -> ()
    %cst_21 = arith.constant dense<0.000000e+00> : vector<2x8x8xf32>
    %21 = tpu.matmul %18, %19, %cst_21 {dimension_numbers = #tpu.dot_dimension_numbers<[2], [2], [1], [1], [0, 0, 0, 1, 1, 1], [0], [0]>} : vector<2x8x16xf32>, vector<2x8x16xf32>, vector<2x8x8xf32> -> vector<2x8x8xf32>
    "tpu.trace_stop"() : () -> ()
    %cst_22 = arith.constant 2.500000e-01 : f32
    %22 = vector.broadcast %cst_22 : f32 to vector<2x8x8xf32>
    %23 = arith.mulf %21, %22 : vector<2x8x8xf32>
    %cst_23 = arith.constant dense<0xFF800000> : vector<2x8xf32>
    %24 = vector.multi_reduction <maximumf>, %23, %cst_23 [2] : vector<2x8x8xf32> to vector<2x8xf32>
    %25 = vector.shape_cast %24 : vector<2x8xf32> to vector<2x8x1xf32>
    %26 = vector.broadcast %25 : vector<2x8x1xf32> to vector<2x8x8xf32>
    %27 = arith.subf %23, %26 : vector<2x8x8xf32>
    %28 = math.exp %27 : vector<2x8x8xf32>
    %cst_24 = arith.constant dense<0.000000e+00> : vector<2x8xf32>
    %29 = vector.multi_reduction <add>, %28, %cst_24 [2] : vector<2x8x8xf32> to vector<2x8xf32>
    %30 = vector.shape_cast %29 : vector<2x8xf32> to vector<2x8x1xf32>
    %31 = tpu.reciprocal %30 {approx = true} : vector<2x8x1xf32> -> vector<2x8x1xf32>
    %32 = vector.broadcast %31 : vector<2x8x1xf32> to vector<2x8x8xf32>
    %33 = arith.mulf %28, %32 : vector<2x8x8xf32>
    %c0_25 = arith.constant 0 : index
    %c0_26 = arith.constant 0 : index
    %c0_27 = arith.constant 0 : index
    %c0_28 = arith.constant 0 : index
    %34 = vector.load %arg10[%c0_25, %c0_26, %c0_27, %c0_28] : memref<1x2x8x8xf32, #tpu.memory_space<vmem>>, vector<1x2x8x8xf32>
    %35 = vector.shape_cast %34 : vector<1x2x8x8xf32> to vector<2x8x8xf32>
    %36 = vector.shape_cast %33 : vector<2x8x8xf32> to vector<1x2x8x8xf32>
    tpu.vector_store %arg10[%c0_25, %c0_26, %c0_27, %c0_28], %36 {strides = array<i32>} : memref<1x2x8x8xf32, #tpu.memory_space<vmem>>, vector<1x2x8x8xf32>,
    "tpu.trace_start"() <{level = 10 : i32, message = "hqk,hkd->hqd"}> : () -> ()
    %cst_29 = arith.constant dense<0.000000e+00> : vector<2x8x16xf32>
    %37 = tpu.matmul %33, %20, %cst_29 {dimension_numbers = #tpu.dot_dimension_numbers<[2], [1], [1], [2], [0, 0, 0, 1, 1, 2], [0], [0]>} : vector<2x8x8xf32>, vector<2x8x16xf32>, vector<2x8x16xf32> -> vector<2x8x16xf32>
    "tpu.trace_stop"() : () -> ()
    %38 = vector.extract_strided_slice %37 {offsets = [0, 0, 0], sizes = [1, 8, 16], strides = [1, 1, 1]} : vector<2x8x16xf32> to vector<1x8x16xf32>
    %39 = vector.shape_cast %38 : vector<1x8x16xf32> to vector<8x16xf32>
    %c0_30 = arith.constant 0 : index
    %c0_31 = arith.constant 0 : index
    %40 = vector.load %arg15[%c0_30, %c0_31] : memref<8x32xf32, #tpu.memory_space<vmem>>, vector<8x16xf32>
    tpu.vector_store %arg15[%c0_30, %c0_31], %39 {strides = array<i32>} : memref<8x32xf32, #tpu.memory_space<vmem>>, vector<8x16xf32>,
    %41 = vector.extract_strided_slice %37 {offsets = [1, 0, 0], sizes = [1, 8, 16], strides = [1, 1, 1]} : vector<2x8x16xf32> to vector<1x8x16xf32>
    %42 = vector.shape_cast %41 : vector<1x8x16xf32> to vector<8x16xf32>
    %c0_32 = arith.constant 0 : index
    %c16 = arith.constant 16 : index
    %43 = vector.load %arg15[%c0_32, %c16] : memref<8x32xf32, #tpu.memory_space<vmem>>, vector<8x16xf32>
    tpu.vector_store %arg15[%c0_32, %c16], %42 {strides = array<i32>} : memref<8x32xf32, #tpu.memory_space<vmem>>, vector<8x16xf32>,
    %c0_33 = arith.constant 0 : index
    %c0_34 = arith.constant 0 : index
    %44 = vector.load %arg15[%c0_33, %c0_34] : memref<8x32xf32, #tpu.memory_space<vmem>>, vector<8x32xf32>
    %c0_35 = arith.constant 0 : index
    %c0_36 = arith.constant 0 : index
    %45 = vector.load %arg8[%c0_35, %c0_36] : memref<32x32xf32, #tpu.memory_space<vmem>>, vector<32x32xf32>
    %cst_37 = arith.constant dense<0.000000e+00> : vector<8x32xf32>
    %46 = tpu.matmul %44, %45, %cst_37 {dimension_numbers = #tpu.dot_dimension_numbers<[1], [0], [0], [1], [0, 0, 1, 1], [], []>} : vector<8x32xf32>, vector<32x32xf32>, vector<8x32xf32> -> vector<8x32xf32>
    %c0_38 = arith.constant 0 : index
    %c0_39 = arith.constant 0 : index
    %47 = vector.load %arg9[%c0_38, %c0_39] : memref<1x32xf32, #tpu.memory_space<vmem>>, vector<1x32xf32>
    %48 = vector.broadcast %47 : vector<1x32xf32> to vector<8x32xf32>
    %49 = arith.addf %46, %48 : vector<8x32xf32>
    %c0_40 = arith.constant 0 : index
    %c0_41 = arith.constant 0 : index
    %c0_42 = arith.constant 0 : index
    %50 = vector.load %arg11[%c0_40, %c0_41, %c0_42] : memref<1x8x32xf32, #tpu.memory_space<vmem>>, vector<1x8x32xf32>
    %51 = vector.shape_cast %50 : vector<1x8x32xf32> to vector<8x32xf32>
    %52 = vector.shape_cast %49 : vector<8x32xf32> to vector<1x8x32xf32>
    tpu.vector_store %arg11[%c0_40, %c0_41, %c0_42], %52 {strides = array<i32>} : memref<1x8x32xf32, #tpu.memory_space<vmem>>, vector<1x8x32xf32>,
    return
  }
  func.func @transform_0(%arg0: i32, %arg1: i32) -> (i32, i32, i32) {
    %c0_i32 = arith.constant 0 : i32
    %c0_i32_0 = arith.constant 0 : i32
    return %arg0, %arg1, %c0_i32 : i32, i32, i32
  }
  func.func @transform_1(%arg0: i32, %arg1: i32) -> (i32, i32, i32) {
    %c0_i32 = arith.constant 0 : i32
    %c0_i32_0 = arith.constant 0 : i32
    %c0_i32_1 = arith.constant 0 : i32
    return %arg0, %c0_i32, %c0_i32_0 : i32, i32, i32
  }
  func.func @transform_2(%arg0: i32, %arg1: i32) -> (i32, i32) {
    %c0_i32 = arith.constant 0 : i32
    %c0_i32_0 = arith.constant 0 : i32
    %c0_i32_1 = arith.constant 0 : i32
    return %c0_i32, %c0_i32_0 : i32, i32
  }
  func.func @transform_3(%arg0: i32, %arg1: i32) -> (i32, i32) {
    %c0_i32 = arith.constant 0 : i32
    %c0_i32_0 = arith.constant 0 : i32
    %c0_i32_1 = arith.constant 0 : i32
    return %c0_i32, %c0_i32_0 : i32, i32
  }
  func.func @transform_4(%arg0: i32, %arg1: i32) -> (i32, i32) {
    %c0_i32 = arith.constant 0 : i32
    %c0_i32_0 = arith.constant 0 : i32
    %c0_i32_1 = arith.constant 0 : i32
    return %c0_i32, %c0_i32_0 : i32, i32
  }
  func.func @transform_5(%arg0: i32, %arg1: i32) -> (i32, i32) {
    %c0_i32 = arith.constant 0 : i32
    %c0_i32_0 = arith.constant 0 : i32
    %c0_i32_1 = arith.constant 0 : i32
    return %c0_i32, %c0_i32_0 : i32, i32
  }
  func.func @transform_6(%arg0: i32, %arg1: i32) -> (i32, i32) {
    %c0_i32 = arith.constant 0 : i32
    %c0_i32_0 = arith.constant 0 : i32
    %c0_i32_1 = arith.constant 0 : i32
    return %c0_i32, %c0_i32_0 : i32, i32
  }
  func.func @transform_7(%arg0: i32, %arg1: i32) -> (i32, i32) {
    %c0_i32 = arith.constant 0 : i32
    %c0_i32_0 = arith.constant 0 : i32
    %c0_i32_1 = arith.constant 0 : i32
    return %c0_i32, %c0_i32_0 : i32, i32
  }
  func.func @transform_8(%arg0: i32, %arg1: i32) -> (i32, i32, i32, i32) {
    %c0_i32 = arith.constant 0 : i32
    %c0_i32_0 = arith.constant 0 : i32
    %c0_i32_1 = arith.constant 0 : i32
    return %arg0, %c0_i32, %arg1, %c0_i32_0 : i32, i32, i32, i32
  }
  func.func @transform_9(%arg0: i32, %arg1: i32) -> (i32, i32, i32) {
    %c0_i32 = arith.constant 0 : i32
    %c0_i32_0 = arith.constant 0 : i32
    return %arg0, %arg1, %c0_i32 : i32, i32, i32
  }
}

module attributes {stable_mosaic.version = 11 : i64} {
  func.func @_mha_kernel(%arg0: i32, %arg1: i32, %arg2: memref<1x8x32xf32, #tpu.memory_space<vmem>>, %arg3: memref<1x8x32xf32, #tpu.memory_space<vmem>>, %arg4: memref<32x32xf32, #tpu.memory_space<vmem>>, %arg5: memref<1x32xf32, #tpu.memory_space<vmem>>, %arg6: memref<32x64xf32, #tpu.memory_space<vmem>>, %arg7: memref<1x64xf32, #tpu.memory_space<vmem>>, %arg8: memref<32x32xf32, #tpu.memory_space<vmem>>, %arg9: memref<1x32xf32, #tpu.memory_space<vmem>>, %arg10: memref<1x2x8x8xf32, #tpu.memory_space<vmem>>, %arg11: memref<1x8x32xf32, #tpu.memory_space<vmem>>, %arg12: memref<2x8x16xf32, #tpu.memory_space<vmem>>, %arg13: memref<2x8x16xf32, #tpu.memory_space<vmem>>, %arg14: memref<2x8x16xf32, #tpu.memory_space<vmem>>, %arg15: memref<8x32xf32, #tpu.memory_space<vmem>>) attributes {dimension_semantics = [#tpu.dimension_semantics<parallel>, #tpu.dimension_semantics<arbitrary>], iteration_bounds = array<i64: 2, 1>, scalar_prefetch = 0 : i64, scratch_operands = 4 : i64, tpu.core_type = #tpu.core_type<tc>, window_params = [{transform_indices = @transform_0, window_bounds = array<i64: 1, 8, 32>}, {transform_indices = @transform_1, window_bounds = array<i64: 1, 8, 32>}, {pipeline_mode = #tpu.pipeline_mode<synchronous>, transform_indices = @transform_2, window_bounds = array<i64: 32, 32>}, {pipeline_mode = #tpu.pipeline_mode<synchronous>, transform_indices = @transform_3, window_bounds = array<i64: 1, 32>}, {pipeline_mode = #tpu.pipeline_mode<synchronous>, transform_indices = @transform_4, window_bounds = array<i64: 32, 64>}, {pipeline_mode = #tpu.pipeline_mode<synchronous>, transform_indices = @transform_5, window_bounds = array<i64: 1, 64>}, {pipeline_mode = #tpu.pipeline_mode<synchronous>, transform_indices = @transform_6, window_bounds = array<i64: 32, 32>}, {pipeline_mode = #tpu.pipeline_mode<synchronous>, transform_indices = @transform_7, window_bounds = array<i64: 1, 32>}, {transform_indices = @transform_8, window_bounds = array<i64: 1, 2, 8, 8>}, {transform_indices = @transform_9, window_bounds = array<i64: 1, 8, 32>}]} {
    %c0_i32 = arith.constant 0 : i32
    %0 = arith.cmpi eq, %arg1, %c0_i32 : i32
    %1 = arith.extui %0 : i1 to i32
    %c0_i32_0 = arith.constant 0 : i32
    %2 = arith.cmpi ne, %1, %c0_i32_0 : i32
    scf.if %2 {
      %c0_43 = arith.constant 0 : index
      %c0_44 = arith.constant 0 : index
      %c0_45 = arith.constant 0 : index
      %53 = vector.load %arg3[%c0_43, %c0_44, %c0_45] : memref<1x8x32xf32, #tpu.memory_space<vmem>>, vector<1x8x32xf32>
      %54 = vector.shape_cast %53 : vector<1x8x32xf32> to vector<8x32xf32>
      %c0_46 = arith.constant 0 : index
      %c0_47 = arith.constant 0 : index
      %55 = vector.load %arg6[%c0_46, %c0_47] : memref<32x64xf32, #tpu.memory_space<vmem>>, vector<32x64xf32>
      %cst_48 = arith.constant dense<0.000000e+00> : vector<8x64xf32>
      %56 = tpu.matmul %54, %55, %cst_48 {dimension_numbers = #tpu.dot_dimension_numbers<[1], [0], [0], [1], [0, 0, 1, 1], [], []>} : vector<8x32xf32>, vector<32x64xf32>, vector<8x64xf32> -> vector<8x64xf32>
      %c0_49 = arith.constant 0 : index
      %c0_50 = arith.constant 0 : index
      %57 = vector.load %arg7[%c0_49, %c0_50] : memref<1x64xf32, #tpu.memory_space<vmem>>, vector<1x64xf32>
      %58 = vector.broadcast %57 : vector<1x64xf32> to vector<8x64xf32>
      %59 = arith.addf %56, %58 : vector<8x64xf32>
      %60 = vector.extract_strided_slice %59 {offsets = [0, 0], sizes = [8, 16], strides = [1, 1]} : vector<8x64xf32> to vector<8x16xf32>
      %c0_51 = arith.constant 0 : index
      %c0_52 = arith.constant 0 : index
      %c0_53 = arith.constant 0 : index
      %61 = vector.load %arg13[%c0_51, %c0_52, %c0_53] : memref<2x8x16xf32, #tpu.memory_space<vmem>>, vector<1x8x16xf32>
      %62 = vector.shape_cast %61 : vector<1x8x16xf32> to vector<8x16xf32>
      %63 = vector.shape_cast %60 : vector<8x16xf32> to vector<1x8x16xf32>
      tpu.vector_store %arg13[%c0_51, %c0_52, %c0_53], %63 {strides = array<i32>} : memref<2x8x16xf32, #tpu.memory_space<vmem>>, vector<1x8x16xf32>,
      %64 = vector.extract_strided_slice %59 {offsets = [0, 32], sizes = [8, 16], strides = [1, 1]} : vector<8x64xf32> to vector<8x16xf32>
      %c0_54 = arith.constant 0 : index
      %c0_55 = arith.constant 0 : index
      %c0_56 = arith.constant 0 : index
      %65 = vector.load %arg14[%c0_54, %c0_55, %c0_56] : memref<2x8x16xf32, #tpu.memory_space<vmem>>, vector<1x8x16xf32>
      %66 = vector.shape_cast %65 : vector<1x8x16xf32> to vector<8x16xf32>
      %67 = vector.shape_cast %64 : vector<8x16xf32> to vector<1x8x16xf32>
      tpu.vector_store %arg14[%c0_54, %c0_55, %c0_56], %67 {strides = array<i32>} : memref<2x8x16xf32, #tpu.memory_space<vmem>>, vector<1x8x16xf32>,
      %68 = vector.extract_strided_slice %59 {offsets = [0, 16], sizes = [8, 16], strides = [1, 1]} : vector<8x64xf32> to vector<8x16xf32>
      %c1_57 = arith.constant 1 : index
      %c0_58 = arith.constant 0 : index
      %c0_59 = arith.constant 0 : index
      %69 = vector.load %arg13[%c1_57, %c0_58, %c0_59] : memref<2x8x16xf32, #tpu.memory_space<vmem>>, vector<1x8x16xf32>
      %70 = vector.shape_cast %69 : vector<1x8x16xf32> to vector<8x16xf32>
      %71 = vector.shape_cast %68 : vector<8x16xf32> to vector<1x8x16xf32>
      tpu.vector_store %arg13[%c1_57, %c0_58, %c0_59], %71 {strides = array<i32>} : memref<2x8x16xf32, #tpu.memory_space<vmem>>, vector<1x8x16xf32>,
      %72 = vector.extract_strided_slice %59 {offsets = [0, 48], sizes = [8, 16], strides = [1, 1]} : vector<8x64xf32> to vector<8x16xf32>
      %c1_60 = arith.constant 1 : index
      %c0_61 = arith.constant 0 : index
      %c0_62 = arith.constant 0 : index
      %73 = vector.load %arg14[%c1_60, %c0_61, %c0_62] : memref<2x8x16xf32, #tpu.memory_space<vmem>>, vector<1x8x16xf32>
      %74 = vector.shape_cast %73 : vector<1x8x16xf32> to vector<8x16xf32>
      %75 = vector.shape_cast %72 : vector<8x16xf32> to vector<1x8x16xf32>
      tpu.vector_store %arg14[%c1_60, %c0_61, %c0_62], %75 {strides = array<i32>} : memref<2x8x16xf32, #tpu.memory_space<vmem>>, vector<1x8x16xf32>,
    } else {
    }
    %c0 = arith.constant 0 : index
    %c0_1 = arith.constant 0 : index
    %c0_2 = arith.constant 0 : index
    %3 = vector.load %arg2[%c0, %c0_1, %c0_2] : memref<1x8x32xf32, #tpu.memory_space<vmem>>, vector<1x8x32xf32>
    %4 = vector.shape_cast %3 : vector<1x8x32xf32> to vector<8x32xf32>
    %c0_3 = arith.constant 0 : index
    %c0_4 = arith.constant 0 : index
    %5 = vector.load %arg4[%c0_3, %c0_4] : memref<32x32xf32, #tpu.memory_space<vmem>>, vector<32x32xf32>
    %cst = arith.constant dense<0.000000e+00> : vector<8x32xf32>
    %6 = tpu.matmul %4, %5, %cst {dimension_numbers = #tpu.dot_dimension_numbers<[1], [0], [0], [1], [0, 0, 1, 1], [], []>} : vector<8x32xf32>, vector<32x32xf32>, vector<8x32xf32> -> vector<8x32xf32>
    %c0_5 = arith.constant 0 : index
    %c0_6 = arith.constant 0 : index
    %7 = vector.load %arg5[%c0_5, %c0_6] : memref<1x32xf32, #tpu.memory_space<vmem>>, vector<1x32xf32>
    %8 = vector.broadcast %7 : vector<1x32xf32> to vector<8x32xf32>
    %9 = arith.addf %6, %8 : vector<8x32xf32>
    %10 = vector.extract_strided_slice %9 {offsets = [0, 0], sizes = [8, 16], strides = [1, 1]} : vector<8x32xf32> to vector<8x16xf32>
    %c0_7 = arith.constant 0 : index
    %c0_8 = arith.constant 0 : index
    %c0_9 = arith.constant 0 : index
    %11 = vector.load %arg12[%c0_7, %c0_8, %c0_9] : memref<2x8x16xf32, #tpu.memory_space<vmem>>, vector<1x8x16xf32>
    %12 = vector.shape_cast %11 : vector<1x8x16xf32> to vector<8x16xf32>
    %13 = vector.shape_cast %10 : vector<8x16xf32> to vector<1x8x16xf32>
    tpu.vector_store %arg12[%c0_7, %c0_8, %c0_9], %13 {strides = array<i32>} : memref<2x8x16xf32, #tpu.memory_space<vmem>>, vector<1x8x16xf32>,
    %14 = vector.extract_strided_slice %9 {offsets = [0, 16], sizes = [8, 16], strides = [1, 1]} : vector<8x32xf32> to vector<8x16xf32>
    %c1 = arith.constant 1 : index
    %c0_10 = arith.constant 0 : index
    %c0_11 = arith.constant 0 : index
    %15 = vector.load %arg12[%c1, %c0_10, %c0_11] : memref<2x8x16xf32, #tpu.memory_space<vmem>>, vector<1x8x16xf32>
    %16 = vector.shape_cast %15 : vector<1x8x16xf32> to vector<8x16xf32>
    %17 = vector.shape_cast %14 : vector<8x16xf32> to vector<1x8x16xf32>
    tpu.vector_store %arg12[%c1, %c0_10, %c0_11], %17 {strides = array<i32>} : memref<2x8x16xf32, #tpu.memory_space<vmem>>, vector<1x8x16xf32>,
    %c0_12 = arith.constant 0 : index
    %c0_13 = arith.constant 0 : index
    %c0_14 = arith.constant 0 : index
    %18 = vector.load %arg12[%c0_12, %c0_13, %c0_14] : memref<2x8x16xf32, #tpu.memory_space<vmem>>, vector<2x8x16xf32>
    %c0_15 = arith.constant 0 : index
    %c0_16 = arith.constant 0 : index
    %c0_17 = arith.constant 0 : index
    %19 = vector.load %arg13[%c0_15, %c0_16, %c0_17] : memref<2x8x16xf32, #tpu.memory_space<vmem>>, vector<2x8x16xf32>
    %c0_18 = arith.constant 0 : index
    %c0_19 = arith.constant 0 : index
    %c0_20 = arith.constant 0 : index
    %20 = vector.load %arg14[%c0_18, %c0_19, %c0_20] : memref<2x8x16xf32, #tpu.memory_space<vmem>>, vector<2x8x16xf32>
    "tpu.trace_start"() <{level = 10 : i32, message = "hqd,hkd->hqk"}> : () -> ()
    %cst_21 = arith.constant dense<0.000000e+00> : vector<2x8x8xf32>
    %21 = tpu.matmul %18, %19, %cst_21 {dimension_numbers = #tpu.dot_dimension_numbers<[2], [2], [1], [1], [0, 0, 0, 1, 1, 1], [0], [0]>} : vector<2x8x16xf32>, vector<2x8x16xf32>, vector<2x8x8xf32> -> vector<2x8x8xf32>
    "tpu.trace_stop"() : () -> ()
    %cst_22 = arith.constant 2.500000e-01 : f32
    %22 = vector.broadcast %cst_22 : f32 to vector<2x8x8xf32>
    %23 = arith.mulf %21, %22 : vector<2x8x8xf32>
    %cst_23 = arith.constant dense<0xFF800000> : vector<2x8xf32>
    %24 = vector.multi_reduction <maximumf>, %23, %cst_23 [2] : vector<2x8x8xf32> to vector<2x8xf32>
    %25 = vector.shape_cast %24 : vector<2x8xf32> to vector<2x8x1xf32>
    %26 = vector.broadcast %25 : vector<2x8x1xf32> to vector<2x8x8xf32>
    %27 = arith.subf %23, %26 : vector<2x8x8xf32>
    %28 = math.exp %27 : vector<2x8x8xf32>
    %cst_24 = arith.constant dense<0.000000e+00> : vector<2x8xf32>
    %29 = vector.multi_reduction <add>, %28, %cst_24 [2] : vector<2x8x8xf32> to vector<2x8xf32>
    %30 = vector.shape_cast %29 : vector<2x8xf32> to vector<2x8x1xf32>
    %31 = tpu.reciprocal %30 {approx = true} : vector<2x8x1xf32> -> vector<2x8x1xf32>
    %32 = vector.broadcast %31 : vector<2x8x1xf32> to vector<2x8x8xf32>
    %33 = arith.mulf %28, %32 : vector<2x8x8xf32>
    %c0_25 = arith.constant 0 : index
    %c0_26 = arith.constant 0 : index
    %c0_27 = arith.constant 0 : index
    %c0_28 = arith.constant 0 : index
    %34 = vector.load %arg10[%c0_25, %c0_26, %c0_27, %c0_28] : memref<1x2x8x8xf32, #tpu.memory_space<vmem>>, vector<1x2x8x8xf32>
    %35 = vector.shape_cast %34 : vector<1x2x8x8xf32> to vector<2x8x8xf32>
    %36 = vector.shape_cast %33 : vector<2x8x8xf32> to vector<1x2x8x8xf32>
    tpu.vector_store %arg10[%c0_25, %c0_26, %c0_27, %c0_28], %36 {strides = array<i32>} : memref<1x2x8x8xf32, #tpu.memory_space<vmem>>, vector<1x2x8x8xf32>,
    "tpu.trace_start"() <{level = 10 : i32, message = "hqk,hkd->hqd"}> : () -> ()
    %cst_29 = arith.constant dense<0.000000e+00> : vector<2x8x16xf32>
    %37 = tpu.matmul %33, %20, %cst_29 {dimension_numbers = #tpu.dot_dimension_numbers<[2], [1], [1], [2], [0, 0, 0, 1, 1, 2], [0], [0]>} : vector<2x8x8xf32>, vector<2x8x16xf32>, vector<2x8x16xf32> -> vector<2x8x16xf32>
    "tpu.trace_stop"() : () -> ()
    %38 = vector.extract_strided_slice %37 {offsets = [0, 0, 0], sizes = [1, 8, 16], strides = [1, 1, 1]} : vector<2x8x16xf32> to vector<1x8x16xf32>
    %39 = vector.shape_cast %38 : vector<1x8x16xf32> to vector<8x16xf32>
    %c0_30 = arith.constant 0 : index
    %c0_31 = arith.constant 0 : index
    %40 = vector.load %arg15[%c0_30, %c0_31] : memref<8x32xf32, #tpu.memory_space<vmem>>, vector<8x16xf32>
    tpu.vector_store %arg15[%c0_30, %c0_31], %39 {strides = array<i32>} : memref<8x32xf32, #tpu.memory_space<vmem>>, vector<8x16xf32>,
    %41 = vector.extract_strided_slice %37 {offsets = [1, 0, 0], sizes = [1, 8, 16], strides = [1, 1, 1]} : vector<2x8x16xf32> to vector<1x8x16xf32>
    %42 = vector.shape_cast %41 : vector<1x8x16xf32> to vector<8x16xf32>
    %c0_32 = arith.constant 0 : index
    %c16 = arith.constant 16 : index
    %43 = vector.load %arg15[%c0_32, %c16] : memref<8x32xf32, #tpu.memory_space<vmem>>, vector<8x16xf32>
    tpu.vector_store %arg15[%c0_32, %c16], %42 {strides = array<i32>} : memref<8x32xf32, #tpu.memory_space<vmem>>, vector<8x16xf32>,
    %c0_33 = arith.constant 0 : index
    %c0_34 = arith.constant 0 : index
    %44 = vector.load %arg15[%c0_33, %c0_34] : memref<8x32xf32, #tpu.memory_space<vmem>>, vector<8x32xf32>
    %c0_35 = arith.constant 0 : index
    %c0_36 = arith.constant 0 : index
    %45 = vector.load %arg8[%c0_35, %c0_36] : memref<32x32xf32, #tpu.memory_space<vmem>>, vector<32x32xf32>
    %cst_37 = arith.constant dense<0.000000e+00> : vector<8x32xf32>
    %46 = tpu.matmul %44, %45, %cst_37 {dimension_numbers = #tpu.dot_dimension_numbers<[1], [0], [0], [1], [0, 0, 1, 1], [], []>} : vector<8x32xf32>, vector<32x32xf32>, vector<8x32xf32> -> vector<8x32xf32>
    %c0_38 = arith.constant 0 : index
    %c0_39 = arith.constant 0 : index
    %47 = vector.load %arg9[%c0_38, %c0_39] : memref<1x32xf32, #tpu.memory_space<vmem>>, vector<1x32xf32>
    %48 = vector.broadcast %47 : vector<1x32xf32> to vector<8x32xf32>
    %49 = arith.addf %46, %48 : vector<8x32xf32>
    %c0_40 = arith.constant 0 : index
    %c0_41 = arith.constant 0 : index
    %c0_42 = arith.constant 0 : index
    %50 = vector.load %arg11[%c0_40, %c0_41, %c0_42] : memref<1x8x32xf32, #tpu.memory_space<vmem>>, vector<1x8x32xf32>
    %51 = vector.shape_cast %50 : vector<1x8x32xf32> to vector<8x32xf32>
    %52 = vector.shape_cast %49 : vector<8x32xf32> to vector<1x8x32xf32>
    tpu.vector_store %arg11[%c0_40, %c0_41, %c0_42], %52 {strides = array<i32>} : memref<1x8x32xf32, #tpu.memory_space<vmem>>, vector<1x8x32xf32>,
    return
  }
  func.func @transform_0(%arg0: i32, %arg1: i32) -> (i32, i32, i32) {
    %c0_i32 = arith.constant 0 : i32
    %c0_i32_0 = arith.constant 0 : i32
    return %arg0, %arg1, %c0_i32 : i32, i32, i32
  }
  func.func @transform_1(%arg0: i32, %arg1: i32) -> (i32, i32, i32) {
    %c0_i32 = arith.constant 0 : i32
    %c0_i32_0 = arith.constant 0 : i32
    %c0_i32_1 = arith.constant 0 : i32
    return %arg0, %c0_i32, %c0_i32_0 : i32, i32, i32
  }
  func.func @transform_2(%arg0: i32, %arg1: i32) -> (i32, i32) {
    %c0_i32 = arith.constant 0 : i32
    %c0_i32_0 = arith.constant 0 : i32
    %c0_i32_1 = arith.constant 0 : i32
    return %c0_i32, %c0_i32_0 : i32, i32
  }
  func.func @transform_3(%arg0: i32, %arg1: i32) -> (i32, i32) {
    %c0_i32 = arith.constant 0 : i32
    %c0_i32_0 = arith.constant 0 : i32
    %c0_i32_1 = arith.constant 0 : i32
    return %c0_i32, %c0_i32_0 : i32, i32
  }
  func.func @transform_4(%arg0: i32, %arg1: i32) -> (i32, i32) {
    %c0_i32 = arith.constant 0 : i32
    %c0_i32_0 = arith.constant 0 : i32
    %c0_i32_1 = arith.constant 0 : i32
    return %c0_i32, %c0_i32_0 : i32, i32
  }
  func.func @transform_5(%arg0: i32, %arg1: i32) -> (i32, i32) {
    %c0_i32 = arith.constant 0 : i32
    %c0_i32_0 = arith.constant 0 : i32
    %c0_i32_1 = arith.constant 0 : i32
    return %c0_i32, %c0_i32_0 : i32, i32
  }
  func.func @transform_6(%arg0: i32, %arg1: i32) -> (i32, i32) {
    %c0_i32 = arith.constant 0 : i32
    %c0_i32_0 = arith.constant 0 : i32
    %c0_i32_1 = arith.constant 0 : i32
    return %c0_i32, %c0_i32_0 : i32, i32
  }
  func.func @transform_7(%arg0: i32, %arg1: i32) -> (i32, i32) {
    %c0_i32 = arith.constant 0 : i32
    %c0_i32_0 = arith.constant 0 : i32
    %c0_i32_1 = arith.constant 0 : i32
    return %c0_i32, %c0_i32_0 : i32, i32
  }
  func.func @transform_8(%arg0: i32, %arg1: i32) -> (i32, i32, i32, i32) {
    %c0_i32 = arith.constant 0 : i32
    %c0_i32_0 = arith.constant 0 : i32
    %c0_i32_1 = arith.constant 0 : i32
    return %arg0, %c0_i32, %arg1, %c0_i32_0 : i32, i32, i32, i32
  }
  func.func @transform_9(%arg0: i32, %arg1: i32) -> (i32, i32, i32) {
    %c0_i32 = arith.constant 0 : i32
    %c0_i32_0 = arith.constant 0 : i32
    return %arg0, %arg1, %c0_i32 : i32, i32, i32
  }
}

</mosaic_0001>

<llo_original>
// kernel: tpu_custom_call.1
$region0: #{tpu_custom_call.1}
  #allocation0 [shape = 'u32[]', space=smem, size = 0x4, offset = 0x4, fixed_abs, tag = 'smem constant byte address 0x4 - core index']
  #allocation1 [shape = 'u32[144,128]{1,0:T(1,128)}', space=vmem, size = 0x12000, scoped, tag = 'internal scratch']
  #allocation2 [shape = 'f32[2,8,16]{2,1,0:T(8,128)}', space=vmem, size = 0x2000, scoped, tag = 'scratch operand']
  #allocation3 [shape = 'f32[2,8,16]{2,1,0:T(8,128)}', space=vmem, size = 0x2000, scoped, tag = 'scratch operand']
  #allocation4 [shape = 'f32[2,8,16]{2,1,0:T(8,128)}', space=vmem, size = 0x2000, scoped, tag = 'scratch operand']
  #allocation5 [shape = 'f32[8,32]{1,0:T(8,128)}', space=vmem, size = 0x1000, scoped, tag = 'scratch operand']
  %s0 = inlined_call_operand.hbm [shape: f32[2,8,32], index: 0, kind: input, shape index: {}]
  %s1 = inlined_call_operand.hbm [shape: f32[2,8,32], index: 1, kind: input, shape index: {}]
  %s2 = inlined_call_operand.hbm [shape: f32[32,32], index: 2, kind: input, shape index: {}]
  %s3 = inlined_call_operand.vmem [shape: f32[1,32], index: 3, kind: input, shape index: {}]
  %s4 = inlined_call_operand.hbm [shape: f32[32,64], index: 4, kind: input, shape index: {}]
  %s5 = inlined_call_operand.vmem [shape: f32[1,64], index: 5, kind: input, shape index: {}]
  %s6 = inlined_call_operand.hbm [shape: f32[32,32], index: 6, kind: input, shape index: {}]
  %s7 = inlined_call_operand.vmem [shape: f32[1,32], index: 7, kind: input, shape index: {}]
  %s8 = inlined_call_operand.hbm [shape: f32[2,2,8,8], index: 8, kind: output, shape index: {0}]
  %s9 = inlined_call_operand.hbm [shape: f32[2,8,32], index: 9, kind: output, shape index: {1}]
  %10 = xla_tuple %s8, %s9
  %s11 = sld [smem:[#allocation0]]
  $region97: #{tpu_custom_call.1} parent=0
    _
  %s13 = ssub.s32 1, %s11
  %s14 = scalar_select 0, %s13, %s11
  $region1: #{tpu_custom_call.1} parent=0
    #allocation6 [shape = 'u8[8192]{0}', space=vmem, size = 0x2000, scoped, tag = 'input window, operand 0']
    #allocation7 [shape = 's32[2]{0}', space=sflag, size = 0x8, scoped, tag = 'scoped memory for tpu_custom_call.1']
    #allocation8 [shape = 's32[2]{0}', space=sflag, size = 0x8, scoped, tag = 'scoped memory for tpu_custom_call.1']
    #allocation9 [shape = 'u8[8192]{0}', space=vmem, size = 0x2000, scoped, tag = 'input window, operand 1']
    #allocation10 [shape = 's32[2]{0}', space=sflag, size = 0x8, scoped, tag = 'scoped memory for tpu_custom_call.1']
    #allocation11 [shape = 'u8[16384]{0}', space=vmem, size = 0x4000, scoped, tag = 'input window, operand 2, single buffered']
    #allocation12 [shape = 'u8[16384]{0}', space=vmem, size = 0x4000, scoped, tag = 'input window, operand 4, single buffered']
    #allocation13 [shape = 's32[1]{0}', space=sflag, size = 0x4, scoped, tag = 'scoped memory for tpu_custom_call.1']
    #allocation14 [shape = 'u8[16384]{0}', space=vmem, size = 0x4000, scoped, tag = 'input window, operand 6, single buffered']
    #allocation15 [shape = 'u8[16384]{0}', space=vmem, size = 0x4000, scoped, tag = 'output window, operand 0']
    #allocation16 [shape = 'u8[8192]{0}', space=vmem, size = 0x2000, scoped, tag = 'output window, operand 1']
    #allocation17 [shape = 's32[2]{0}', space=sflag, size = 0x8, scoped, tag = 'scoped memory for tpu_custom_call.1']
    %15 = vsyncpa [#allocation7], 0
    %s16 = scalar_lea.sflag [#allocation7], 1
    %17 = vsyncpa %s16, 0
    %18 = vsyncpa [#allocation10], 0
    %s19 = scalar_lea.sflag [#allocation10], 1
    %20 = vsyncpa %s19, 0
    %21 = vsyncpa [#allocation13], 0
    %22 = vsyncpa [#allocation8], 0
    %s23 = scalar_lea.sflag [#allocation8], 1
    %24 = vsyncpa %s23, 0
    %25 = vsyncpa [#allocation17], 0
    %s26 = scalar_lea.sflag [#allocation17], 1
    %27 = vsyncpa %s26, 0
    loop: start=0, step=1, limit=4
    $region2: #{tpu_custom_call.1} parent=1 // loop_pre_header
      _
    $region3: #{tpu_custom_call.1} parent=1 // loop_header
      %s29 = sphi 0, %s33
      %p30 = scmp.ge.s32.totalorder %s29, 4
      %s36 = sphi 0, %s48
      %s37 = sphi 0, %s44
      %s38 = sphi 0, %s36
      %s39 = sphi 0, %s37
      %s40 = sphi 0, %s38
      %s41 = sphi 0, %s39
      %s53 = sphi 0, %s55
      %s56 = sphi 0, %s53
      %s57 = sphi 0, %s56
      %s73 = sphi 0, %s57
      %s79 = sphi 0, %s81
      %s82 = sphi 0, %s79
      %s83 = sphi 0, %s82
      %s99 = sphi 0, %s83
      %s103 = sphi 0, %s103
      %s105 = sphi 0, %s103
      %s106 = sphi 0, %s105
      %s120 = sphi 0, %s106
      %s124 = sphi 0, %s124
      %s126 = sphi 0, %s124
      %s127 = sphi 0, %s126
      %s141 = sphi 0, %s127
      %s145 = sphi 0, %s145
      %s147 = sphi 0, %s145
      %s148 = sphi 0, %s147
      %s162 = sphi 0, %s148
      %s166 = sphi 0, %s166
      %s168 = sphi 0, %s166
      %s169 = sphi 0, %s168
      %s183 = sphi 0, %s169
      %s187 = sphi 0, %s187
      %s189 = sphi 0, %s187
      %s190 = sphi 0, %s189
      %s204 = sphi 0, %s190
      %s208 = sphi 0, %s208
      %s210 = sphi 0, %s208
      %s211 = sphi 0, %s210
      %s225 = sphi 0, %s211
      %s233 = sphi 0, %s235
      %s236 = sphi 0, %s233
      %s237 = sphi 0, %s236
      %s253 = sphi 0, %s237
      %s261 = sphi 0, %s263
      %s264 = sphi 0, %s261
      %s265 = sphi 0, %s264
      %s281 = sphi 0, %s265
    $region4: #{tpu_custom_call.1} parent=1 // loop_header_branch
      %32 = sbr.rel (%p30) target = $region8
    $region5: #{tpu_custom_call.1} parent=1 // loop_body
      %s34 = ssub.s32 %s29, 1
      %s35 = ssub.s32 %s29, 2
      %s42 = sadd.s32 1, %s37
      %p43 = scmp.ge.s32.totalorder %s42, 1
      %s44 = scalar_select %p43, 0, %s42
      %s45 = sadd.s32 1, %s36
      %s46 = scalar_select %p43, %s45, %s36
      %p47 = scmp.ge.s32.totalorder %s46, 2
      %s48 = scalar_select %p47, 0, %s46
      %s49 = ssub.s32 %s36, %s48
      %s50 = ssub.s32 %s37, %s44
      %s51 = sor.u32 %s49, %s50
      %p52 = scmp.eq.s32.totalorder %s51, 0
      %s54 = sadd.s32 %s53, 1
      %s55 = scalar_select %p52, %s53, %s54
      %p58 = pneg %p52
      %p59 = scmp.eq.s32.totalorder %s29, 1
      %p60 = por %p58, %p59
      %p61 = scmp.ne.s32.totalorder %s53, %s56
      %p62 = scmp.eq.s32.totalorder %s29, 0
      %p63 = por %p61, %p62
      %p64 = scmp.ne.s32.totalorder %s53, %s56
      %p65 = scmp.eq.s32.totalorder %s34, 1
      %p66 = por %p64, %p65
      %p67 = scmp.ne.s32.totalorder %s56, %s57
      %p68 = scmp.eq.s32.totalorder %s34, 0
      %p69 = por %p67, %p68
      %p70 = scmp.ne.s32.totalorder %s56, %s57
      %p71 = scmp.eq.s32.totalorder %s35, 1
      %p72 = por %p70, %p71
      %p74 = scmp.ne.s32.totalorder %s57, %s73
      %p75 = scmp.eq.s32.totalorder %s35, 0
      %p76 = por %p74, %p75
      %s77 = ssub.s32 %s36, %s48
      %p78 = scmp.eq.s32.totalorder %s77, 0
      %s80 = sadd.s32 %s79, 1
      %s81 = scalar_select %p78, %s79, %s80
      %p84 = pneg %p78
      %p85 = scmp.eq.s32.totalorder %s29, 1
      %p86 = por %p84, %p85
      %p87 = scmp.ne.s32.totalorder %s79, %s82
      %p88 = scmp.eq.s32.totalorder %s29, 0
      %p89 = por %p87, %p88
      %p90 = scmp.ne.s32.totalorder %s79, %s82
      %p91 = scmp.eq.s32.totalorder %s34, 1
      %p92 = por %p90, %p91
      %p93 = scmp.ne.s32.totalorder %s82, %s83
      %p94 = scmp.eq.s32.totalorder %s34, 0
      %p95 = por %p93, %p94
      %p96 = scmp.ne.s32.totalorder %s82, %s83
      %p97 = scmp.eq.s32.totalorder %s35, 1
      %p98 = por %p96, %p97
      %p100 = scmp.ne.s32.totalorder %s83, %s99
      %p101 = scmp.eq.s32.totalorder %s35, 0
      %p102 = por %p100, %p101
      %s104 = sadd.s32 %s103, 1
      %p107 = scmp.eq.s32.totalorder %s29, 1
      %p108 = scmp.ne.s32.totalorder %s103, %s105
      %p109 = scmp.eq.s32.totalorder %s29, 0
      %p110 = por %p108, %p109
      %p111 = scmp.ne.s32.totalorder %s103, %s105
      %p112 = scmp.eq.s32.totalorder %s34, 1
      %p113 = por %p111, %p112
      %p114 = scmp.ne.s32.totalorder %s105, %s106
      %p115 = scmp.eq.s32.totalorder %s34, 0
      %p116 = por %p114, %p115
      %p117 = scmp.ne.s32.totalorder %s105, %s106
      %p118 = scmp.eq.s32.totalorder %s35, 1
      %p119 = por %p117, %p118
      %p121 = scmp.ne.s32.totalorder %s106, %s120
      %p122 = scmp.eq.s32.totalorder %s35, 0
      %p123 = por %p121, %p122
      %s125 = sadd.s32 %s124, 1
      %p128 = scmp.eq.s32.totalorder %s29, 1
      %p129 = scmp.ne.s32.totalorder %s124, %s126
      %p130 = scmp.eq.s32.totalorder %s29, 0
      %p131 = por %p129, %p130
      %p132 = scmp.ne.s32.totalorder %s124, %s126
      %p133 = scmp.eq.s32.totalorder %s34, 1
      %p134 = por %p132, %p133
      %p135 = scmp.ne.s32.totalorder %s126, %s127
      %p136 = scmp.eq.s32.totalorder %s34, 0
      %p137 = por %p135, %p136
      %p138 = scmp.ne.s32.totalorder %s126, %s127
      %p139 = scmp.eq.s32.totalorder %s35, 1
      %p140 = por %p138, %p139
      %p142 = scmp.ne.s32.totalorder %s127, %s141
      %p143 = scmp.eq.s32.totalorder %s35, 0
      %p144 = por %p142, %p143
      %s146 = sadd.s32 %s145, 1
      %p149 = scmp.eq.s32.totalorder %s29, 1
      %p150 = scmp.ne.s32.totalorder %s145, %s147
      %p151 = scmp.eq.s32.totalorder %s29, 0
      %p152 = por %p150, %p151
      %p153 = scmp.ne.s32.totalorder %s145, %s147
      %p154 = scmp.eq.s32.totalorder %s34, 1
      %p155 = por %p153, %p154
      %p156 = scmp.ne.s32.totalorder %s147, %s148
      %p157 = scmp.eq.s32.totalorder %s34, 0
      %p158 = por %p156, %p157
      %p159 = scmp.ne.s32.totalorder %s147, %s148
      %p160 = scmp.eq.s32.totalorder %s35, 1
      %p161 = por %p159, %p160
      %p163 = scmp.ne.s32.totalorder %s148, %s162
      %p164 = scmp.eq.s32.totalorder %s35, 0
      %p165 = por %p163, %p164
      %s167 = sadd.s32 %s166, 1
      %p170 = scmp.eq.s32.totalorder %s29, 1
      %p171 = scmp.ne.s32.totalorder %s166, %s168
      %p172 = scmp.eq.s32.totalorder %s29, 0
      %p173 = por %p171, %p172
      %p174 = scmp.ne.s32.totalorder %s166, %s168
      %p175 = scmp.eq.s32.totalorder %s34, 1
      %p176 = por %p174, %p175
      %p177 = scmp.ne.s32.totalorder %s168, %s169
      %p178 = scmp.eq.s32.totalorder %s34, 0
      %p179 = por %p177, %p178
      %p180 = scmp.ne.s32.totalorder %s168, %s169
      %p181 = scmp.eq.s32.totalorder %s35, 1
      %p182 = por %p180, %p181
      %p184 = scmp.ne.s32.totalorder %s169, %s183
      %p185 = scmp.eq.s32.totalorder %s35, 0
      %p186 = por %p184, %p185
      %s188 = sadd.s32 %s187, 1
      %p191 = scmp.eq.s32.totalorder %s29, 1
      %p192 = scmp.ne.s32.totalorder %s187, %s189
      %p193 = scmp.eq.s32.totalorder %s29, 0
      %p194 = por %p192, %p193
      %p195 = scmp.ne.s32.totalorder %s187, %s189
      %p196 = scmp.eq.s32.totalorder %s34, 1
      %p197 = por %p195, %p196
      %p198 = scmp.ne.s32.totalorder %s189, %s190
      %p199 = scmp.eq.s32.totalorder %s34, 0
      %p200 = por %p198, %p199
      %p201 = scmp.ne.s32.totalorder %s189, %s190
      %p202 = scmp.eq.s32.totalorder %s35, 1
      %p203 = por %p201, %p202
      %p205 = scmp.ne.s32.totalorder %s190, %s204
      %p206 = scmp.eq.s32.totalorder %s35, 0
      %p207 = por %p205, %p206
      %s209 = sadd.s32 %s208, 1
      %p212 = scmp.eq.s32.totalorder %s29, 1
      %p213 = scmp.ne.s32.totalorder %s208, %s210
      %p214 = scmp.eq.s32.totalorder %s29, 0
      %p215 = por %p213, %p214
      %p216 = scmp.ne.s32.totalorder %s208, %s210
      %p217 = scmp.eq.s32.totalorder %s34, 1
      %p218 = por %p216, %p217
      %p219 = scmp.ne.s32.totalorder %s210, %s211
      %p220 = scmp.eq.s32.totalorder %s34, 0
      %p221 = por %p219, %p220
      %p222 = scmp.ne.s32.totalorder %s210, %s211
      %p223 = scmp.eq.s32.totalorder %s35, 1
      %p224 = por %p222, %p223
      %p226 = scmp.ne.s32.totalorder %s211, %s225
      %p227 = scmp.eq.s32.totalorder %s35, 0
      %p228 = por %p226, %p227
      %s229 = ssub.s32 %s36, %s48
      %s230 = ssub.s32 %s37, %s44
      %s231 = sor.u32 %s229, %s230
      %p232 = scmp.eq.s32.totalorder %s231, 0
      %s234 = sadd.s32 %s233, 1
      %s235 = scalar_select %p232, %s233, %s234
      %p238 = pneg %p232
      %p239 = scmp.eq.s32.totalorder %s29, 1
      %p240 = por %p238, %p239
      %p241 = scmp.ne.s32.totalorder %s233, %s236
      %p242 = scmp.eq.s32.totalorder %s29, 0
      %p243 = por %p241, %p242
      %p244 = scmp.ne.s32.totalorder %s233, %s236
      %p245 = scmp.eq.s32.totalorder %s34, 1
      %p246 = por %p244, %p245
      %p247 = scmp.ne.s32.totalorder %s236, %s237
      %p248 = scmp.eq.s32.totalorder %s34, 0
      %p249 = por %p247, %p248
      %p250 = scmp.ne.s32.totalorder %s236, %s237
      %p251 = scmp.eq.s32.totalorder %s35, 1
      %p252 = por %p250, %p251
      %p254 = scmp.ne.s32.totalorder %s237, %s253
      %p255 = scmp.eq.s32.totalorder %s35, 0
      %p256 = por %p254, %p255
      %s257 = ssub.s32 %s36, %s48
      %s258 = ssub.s32 %s37, %s44
      %s259 = sor.u32 %s257, %s258
      %p260 = scmp.eq.s32.totalorder %s259, 0
      %s262 = sadd.s32 %s261, 1
      %s263 = scalar_select %p260, %s261, %s262
      %p266 = pneg %p260
      %p267 = scmp.eq.s32.totalorder %s29, 1
      %p268 = por %p266, %p267
      %p269 = scmp.ne.s32.totalorder %s261, %s264
      %p270 = scmp.eq.s32.totalorder %s29, 0
      %p271 = por %p269, %p270
      %p272 = scmp.ne.s32.totalorder %s261, %s264
      %p273 = scmp.eq.s32.totalorder %s34, 1
      %p274 = por %p272, %p273
      %p275 = scmp.ne.s32.totalorder %s264, %s265
      %p276 = scmp.eq.s32.totalorder %s34, 0
      %p277 = por %p275, %p276
      %p278 = scmp.ne.s32.totalorder %s264, %s265
      %p279 = scmp.eq.s32.totalorder %s35, 1
      %p280 = por %p278, %p279
      %p282 = scmp.ne.s32.totalorder %s265, %s281
      %p283 = scmp.eq.s32.totalorder %s35, 0
      %p284 = por %p282, %p283
      %p285 = scmp.le.s32.totalorder 1, %s29
      %p286 = scmp.lt.s32.totalorder %s29, 3
      %p287 = pnand %p285, %p286
      %p288 = pneg %p287
      // Predicated region
      $region9: #{tpu_custom_call.1} parent=5 // pred_check
        _
      $region10: #{tpu_custom_call.1} parent=5 // pred_check_branch
        %290 = sbr.rel (%p287) target = $region12
      $region11: #{tpu_custom_call.1} parent=5 // pred_region
        %s291 = ssub.s32 %s29, 1
        // Predicated region
        $region13: #{tpu_custom_call.1} parent=11 // pred_check
          %p292 = pneg %p116
        $region14: #{tpu_custom_call.1} parent=11 // pred_check_branch
          %294 = sbr.rel (%p292) target = $region16
        $region15: #{tpu_custom_call.1} parent=11 // pred_region
          %s296 = ssub.s32 512, 512
          %297 = vsyncadd [#allocation10], %s296
          %s298 = sshll.u32 [#allocation11], 4
          %s299 = int_to_ptr.vmem [resolvable:$true] %s298
          %304 = dma.hbm_to_vmem [thread:$0]  %s2, 512, %s299, [#allocation10], 128, 128, 8
        $region16: #{tpu_custom_call.1} parent=11 // pred_fallthru
          _
        // Predicated region
        $region17: #{tpu_custom_call.1} parent=11 // pred_check
          %p305 = pneg %p137
        $region18: #{tpu_custom_call.1} parent=11 // pred_check_branch
          %307 = sbr.rel (%p305) target = $region20
        $region19: #{tpu_custom_call.1} parent=11 // pred_region
          _
        $region20: #{tpu_custom_call.1} parent=11 // pred_fallthru
          _
        // Predicated region
        $region21: #{tpu_custom_call.1} parent=11 // pred_check
          %p308 = pneg %p158
        $region22: #{tpu_custom_call.1} parent=11 // pred_check_branch
          %310 = sbr.rel (%p308) target = $region24
        $region23: #{tpu_custom_call.1} parent=11 // pred_region
          %s312 = ssub.s32 512, 512
          %313 = vsyncadd [#allocation13], %s312
          %s314 = sshll.u32 [#allocation12], 4
          %s315 = int_to_ptr.vmem [resolvable:$true] %s314
          %320 = dma.hbm_to_vmem [thread:$0]  %s4, 512, %s315, [#allocation13], 128, 128, 8
        $region24: #{tpu_custom_call.1} parent=11 // pred_fallthru
          _
        // Predicated region
        $region25: #{tpu_custom_call.1} parent=11 // pred_check
          %p321 = pneg %p179
        $region26: #{tpu_custom_call.1} parent=11 // pred_check_branch
          %323 = sbr.rel (%p321) target = $region28
        $region27: #{tpu_custom_call.1} parent=11 // pred_region
          _
        $region28: #{tpu_custom_call.1} parent=11 // pred_fallthru
          _
        // Predicated region
        $region29: #{tpu_custom_call.1} parent=11 // pred_check
          %p324 = pneg %p200
        $region30: #{tpu_custom_call.1} parent=11 // pred_check_branch
          %326 = sbr.rel (%p324) target = $region32
        $region31: #{tpu_custom_call.1} parent=11 // pred_region
          %s328 = ssub.s32 512, 512
          %329 = vsyncadd [#allocation13], %s328
          %s330 = sshll.u32 [#allocation14], 4
          %s331 = int_to_ptr.vmem [resolvable:$true] %s330
          %336 = dma.hbm_to_vmem [thread:$0]  %s6, 512, %s331, [#allocation13], 128, 128, 8
        $region32: #{tpu_custom_call.1} parent=11 // pred_fallthru
          _
        // Predicated region
        $region33: #{tpu_custom_call.1} parent=11 // pred_check
          %p337 = pneg %p221
        $region34: #{tpu_custom_call.1} parent=11 // pred_check_branch
          %339 = sbr.rel (%p337) target = $region36
        $region35: #{tpu_custom_call.1} parent=11 // pred_region
          _
        $region36: #{tpu_custom_call.1} parent=11 // pred_fallthru
          _
      $region12: #{tpu_custom_call.1} parent=5 // pred_fallthru
        _
      %p340 = scmp.lt.s32.totalorder %s29, 2
      // Predicated region
      $region37: #{tpu_custom_call.1} parent=5 // pred_check
        %p341 = pneg %p340
      $region38: #{tpu_custom_call.1} parent=5 // pred_check_branch
        %343 = sbr.rel (%p341) target = $region40
      $region39: #{tpu_custom_call.1} parent=5 // pred_region
        // Predicated region
        $region41: #{tpu_custom_call.1} parent=39 // pred_check
          %p344 = pneg %p63
        $region42: #{tpu_custom_call.1} parent=39 // pred_check_branch
          %346 = sbr.rel (%p344) target = $region44
        $region43: #{tpu_custom_call.1} parent=39 // pred_region
          %s347 = sand.u32 %s53, 1
          %s348 = scalar_lea.sflag [#allocation7], %s347
          %s349 = sand.u32 %s53, 1
          %s350 = smul.addr %s349, 8
          %s351 = scalar_lea.vmem [#allocation6], %s350
          %s353 = ssub.s32 128, 128
          %354 = vsyncadd %s348, %s353
          %s355 = sadd.s32 %s37, %s36
          %s356 = smul.addr %s355, 128
          %s357 = scalar_lea.hbm %s0, %s356
          %s359 = sshll.u32 %s351, 4
          %s360 = int_to_ptr.vmem [resolvable:$true] %s359
          %362 = dma.hbm_to_vmem [thread:$0]  %s357, 128, %s360, %s348
        $region44: #{tpu_custom_call.1} parent=39 // pred_fallthru
          _
        // Predicated region
        $region45: #{tpu_custom_call.1} parent=39 // pred_check
          %p363 = pneg %p89
        $region46: #{tpu_custom_call.1} parent=39 // pred_check_branch
          %365 = sbr.rel (%p363) target = $region48
        $region47: #{tpu_custom_call.1} parent=39 // pred_region
          %s366 = sand.u32 %s29, 1
          %s367 = scalar_lea.sflag [#allocation10], %s366
          %s368 = sand.u32 %s79, 1
          %s369 = smul.addr %s368, 8
          %s370 = scalar_lea.vmem [#allocation9], %s369
          %s372 = ssub.s32 128, 128
          %373 = vsyncadd %s367, %s372
          %s374 = smul.addr %s36, 128
          %s375 = scalar_lea.hbm %s1, %s374
          %s377 = sshll.u32 %s370, 4
          %s378 = int_to_ptr.vmem [resolvable:$true] %s377
          %380 = dma.hbm_to_vmem [thread:$0]  %s375, 128, %s378, %s367
        $region48: #{tpu_custom_call.1} parent=39 // pred_fallthru
          _
      $region40: #{tpu_custom_call.1} parent=5 // pred_fallthru
        _
      %p381 = scmp.le.s32.totalorder 1, %s29
      %p382 = scmp.lt.s32.totalorder %s29, 3
      %p383 = pnand %p381, %p382
      %p384 = pneg %p383
      // Predicated region
      $region49: #{tpu_custom_call.1} parent=5 // pred_check
        _
      $region50: #{tpu_custom_call.1} parent=5 // pred_check_branch
        %386 = sbr.rel (%p383) target = $region52
      $region51: #{tpu_custom_call.1} parent=5 // pred_region
        %s387 = ssub.s32 %s29, 1
        %s388 = sand.u32 %s56, 1
        %s389 = scalar_lea.sflag [#allocation7], %s388
        %s390 = sand.u32 %s56, 1
        %s391 = smul.addr %s390, 8
        %s392 = scalar_lea.vmem [#allocation6], %s391
        // Predicated region
        $region53: #{tpu_custom_call.1} parent=51 // pred_check
          %p393 = pneg %p69
        $region54: #{tpu_custom_call.1} parent=51 // pred_check_branch
          %395 = sbr.rel (%p393) target = $region56
        $region55: #{tpu_custom_call.1} parent=51 // pred_region
          %396 = dma.done %s389, 128
        $region56: #{tpu_custom_call.1} parent=51 // pred_fallthru
          _
        %s397 = sand.u32 %s34, 1
        %s398 = scalar_lea.sflag [#allocation10], %s397
        %s399 = sand.u32 %s82, 1
        %s400 = smul.addr %s399, 8
        %s401 = scalar_lea.vmem [#allocation9], %s400
        // Predicated region
        $region57: #{tpu_custom_call.1} parent=51 // pred_check
          %p402 = pneg %p95
        $region58: #{tpu_custom_call.1} parent=51 // pred_check_branch
          %404 = sbr.rel (%p402) target = $region60
        $region59: #{tpu_custom_call.1} parent=51 // pred_region
          %405 = dma.done %s398, 128
        $region60: #{tpu_custom_call.1} parent=51 // pred_fallthru
          _
        // Predicated region
        $region61: #{tpu_custom_call.1} parent=51 // pred_check
          %p406 = pneg %p116
        $region62: #{tpu_custom_call.1} parent=51 // pred_check_branch
          %408 = sbr.rel (%p406) target = $region64
        $region63: #{tpu_custom_call.1} parent=51 // pred_region
          %409 = dma.done [#allocation10], 512
        $region64: #{tpu_custom_call.1} parent=51 // pred_fallthru
          _
        // Predicated region
        $region65: #{tpu_custom_call.1} parent=51 // pred_check
          %p410 = pneg %p158
        $region66: #{tpu_custom_call.1} parent=51 // pred_check_branch
          %412 = sbr.rel (%p410) target = $region68
        $region67: #{tpu_custom_call.1} parent=51 // pred_region
          %413 = dma.done [#allocation13], 512
        $region68: #{tpu_custom_call.1} parent=51 // pred_fallthru
          _
        // Predicated region
        $region69: #{tpu_custom_call.1} parent=51 // pred_check
          %p414 = pneg %p200
        $region70: #{tpu_custom_call.1} parent=51 // pred_check_branch
          %416 = sbr.rel (%p414) target = $region72
        $region71: #{tpu_custom_call.1} parent=51 // pred_region
          %417 = dma.done [#allocation13], 512
        $region72: #{tpu_custom_call.1} parent=51 // pred_fallthru
          _
        %s418 = sand.u32 %s56, 1
        %s419 = scalar_lea.sflag [#allocation7], %s418
        %s420 = sand.u32 %s56, 1
        %s421 = smul.addr %s420, 8
        %s422 = scalar_lea.vmem [#allocation6], %s421
        %p423 = pneg %p69
        %p424 = pneg %p66
        %s425 = sand.u32 %s34, 1
        %s426 = scalar_lea.sflag [#allocation10], %s425
        %s427 = sand.u32 %s82, 1
        %s428 = smul.addr %s427, 8
        %s429 = scalar_lea.vmem [#allocation9], %s428
        %p430 = pneg %p95
        %p431 = pneg %p92
        %p432 = pneg %p116
        %p433 = pneg %p113
        %p434 = pneg %p137
        %p435 = pneg %p134
        %p436 = pneg %p158
        %p437 = pneg %p155
        %p438 = pneg %p179
        %p439 = pneg %p176
        %p440 = pneg %p200
        %p441 = pneg %p197
        %p442 = pneg %p221
        %p443 = pneg %p218
        %p444 = pneg %p249
        %p445 = pneg %p246
        %s446 = sand.u32 %s236, 1
        %s447 = scalar_lea.sflag [#allocation8], %s446
        %s448 = sand.u32 %s236, 1
        %s449 = smul.addr %s448, 16
        %s450 = scalar_lea.vmem [#allocation15], %s449
        %p451 = pneg %p277
        %p452 = pneg %p274
        %s453 = sand.u32 %s264, 1
        %s454 = scalar_lea.sflag [#allocation17], %s453
        %s455 = sand.u32 %s264, 1
        %s456 = smul.addr %s455, 8
        %s457 = scalar_lea.vmem [#allocation16], %s456
        %p458 = scmp.eq.s32.totalorder %s39, 0
        // Predicated region
        $region73: #{tpu_custom_call.1} parent=51 // pred_check
          %p459 = pneg %p458
        $region74: #{tpu_custom_call.1} parent=51 // pred_check_branch
          %461 = sbr.rel (%p459) target = $region76
        $region75: #{tpu_custom_call.1} parent=51 // pred_region
          %v462 = vld [vmem:[%s401] sm:$0xff]
          %v463 = vld [vmem:[#allocation12] sm:$0xff]
          %v464 = vld [vmem:[#allocation12 + $0x8] sm:$0xff]
          %v465 = vld [vmem:[#allocation12 + $0x10] sm:$0xff]
          %v466 = vld [vmem:[#allocation12 + $0x18] sm:$0xff]
          %v467 = vld [vmem:[%s5] sm:$0x1]
          %v469 = vlaneseq
          %v470 = vshrl.u32 %v469, 7
          %v471 = vsub.s32 0, %v470
          %v472 = vrot.slane %v467, %v471
          %vm474 = vcmask 261120
          %v476 = vsel %vm474, %v462, 0
          %478 = vmatprep.subr.mxu0 0.0
          %479 = vmatpush1.msra.mxu0 0.0
          %480 = vmatprep.subr.mxu0 0.0
          %481 = vmatpush1.msra.mxu0 0.0
          %482 = vmatprep.subr.mxu0 0.0
          %483 = vmatpush1.msra.mxu0 0.0
          %484 = vmatprep.subr.mxu0 0.0
          %485 = vmatpush1.msra.mxu0 0.0
          %486 = vmatprep.subr.mxu0 0.0
          %487 = vmatpush1.msra.mxu0 0.0
          %488 = vmatprep.subr.mxu0 0.0
          %489 = vmatpush1.msra.mxu0 0.0
          %490 = vmatprep.subr.mxu0 0.0
          %491 = vmatpush1.msra.mxu0 0.0
          %492 = vmatprep.subr.mxu0 0.0
          %493 = vmatpush1.msra.mxu0 0.0
          %494 = vmatprep.subr.mxu0 0.0
          %495 = vmatpush1.msra.mxu0 0.0
          %496 = vmatprep.subr.mxu0 0.0
          %497 = vmatpush1.msra.mxu0 0.0
          %498 = vmatprep.subr.mxu0 0.0
          %499 = vmatpush1.msra.mxu0 0.0
          %500 = vmatprep.subr.mxu0 0.0
          %501 = vmatpush1.msra.mxu0 0.0
          %502 = vmatprep.subr.mxu0 0.0
          %503 = vmatpush1.msra.mxu0 %v466
          %504 = vmatprep.subr.mxu0 0.0
          %505 = vmatpush1.msra.mxu0 %v465
          %506 = vmatprep.subr.mxu0 0.0
          %507 = vmatpush1.msra.mxu0 %v464
          %508 = vmatprep.subr.mxu0 0.0
          %509 = vmatpush1.msra.mxu0 %v463
          %510 = vmatprep.subr.mxu0 0.0
          %511 = vmatpush2.msra.mxu0 0.0
          %512 = vmatprep.subr.mxu0 0.0
          %513 = vmatpush2.msra.mxu0 0.0
          %514 = vmatprep.subr.mxu0 0.0
          %515 = vmatpush2.msra.mxu0 0.0
          %516 = vmatprep.subr.mxu0 0.0
          %517 = vmatpush2.msra.mxu0 0.0
          %518 = vmatprep.subr.mxu0 0.0
          %519 = vmatpush2.msra.mxu0 0.0
          %520 = vmatprep.subr.mxu0 0.0
          %521 = vmatpush2.msra.mxu0 0.0
          %522 = vmatprep.subr.mxu0 0.0
          %523 = vmatpush2.msra.mxu0 0.0
          %524 = vmatprep.subr.mxu0 0.0
          %525 = vmatpush2.msra.mxu0 0.0
          %526 = vmatprep.subr.mxu0 0.0
          %527 = vmatpush2.msra.mxu0 0.0
          %528 = vmatprep.subr.mxu0 0.0
          %529 = vmatpush2.msra.mxu0 0.0
          %530 = vmatprep.subr.mxu0 0.0
          %531 = vmatpush2.msra.mxu0 0.0
          %532 = vmatprep.subr.mxu0 0.0
          %533 = vmatpush2.msra.mxu0 0.0
          %534 = vmatprep.subr.mxu0 0.0
          %535 = vmatpush2.msra.mxu0 0.0
          %536 = vmatprep.subr.mxu0 0.0
          %537 = vmatpush2.msra.mxu0 0.0
          %538 = vmatprep.subr.mxu0 0.0
          %539 = vmatpush2.msra.mxu0 0.0
          %540 = vmatprep.subr.mxu0 0.0
          %541 = vmatpush2.msra.mxu0 0.0
          %542 = vmatprep.mubr.f32.mxu0 0.0
          %543 = vmatmul.mubr.f32.gmra.mxu0 %v476
          %v544 = vpop.f32.mrf.mxu0
          %v545 = vadd.f32 %v472, %v544
          %v546 = vpop.f32.mrf.mxu0
          %547 = vdwg.mxu0
          %vm548 = vcmask 130048
          %549 = vst.msk [vmem:[#allocation3] sm:$0xff] %vm548, %v545
          %551 = vrot.lane.b32.xlu0 %v545, 96
          %v552 = vpop.permute.xlu0 %551
          %554 = vst.msk [vmem:[#allocation4] sm:$0xff] %vm548, %v552
          %555 = vrot.lane.b32.xlu0 %v545, 112
          %v556 = vpop.permute.xlu0 %555
          %s558 = scalar_lea.vmem [#allocation3], 8
          %559 = vst.msk [vmem:[%s558] sm:$0xff] %vm548, %v556
          %560 = vrot.lane.b32.xlu0 %v545, 80
          %v561 = vpop.permute.xlu0 %560
          %s563 = scalar_lea.vmem [#allocation4], 8
          %564 = vst.msk [vmem:[%s563] sm:$0xff] %vm548, %v561
        $region76: #{tpu_custom_call.1} parent=51 // pred_fallthru
          _
        %v565 = vld [vmem:[%s392] sm:$0xff]
        %v566 = vld [vmem:[#allocation11] sm:$0xff]
        %v567 = vld [vmem:[#allocation11 + $0x8] sm:$0xff]
        %v568 = vld [vmem:[#allocation11 + $0x10] sm:$0xff]
        %v569 = vld [vmem:[#allocation11 + $0x18] sm:$0xff]
        %v570 = vld [vmem:[%s3] sm:$0x1]
        %v572 = vlaneseq
        %v573 = vshrl.u32 %v572, 7
        %v574 = vsub.s32 0, %v573
        %v575 = vrot.slane %v570, %v574
        %vm577 = vcmask 261120
        %v579 = vsel %vm577, %v565, 0
        %581 = vmatprep.subr.mxu0 0.0
        %582 = vmatpush1.msra.mxu0 0.0
        %583 = vmatprep.subr.mxu0 0.0
        %584 = vmatpush1.msra.mxu0 0.0
        %585 = vmatprep.subr.mxu0 0.0
        %586 = vmatpush1.msra.mxu0 0.0
        %587 = vmatprep.subr.mxu0 0.0
        %588 = vmatpush1.msra.mxu0 0.0
        %589 = vmatprep.subr.mxu0 0.0
        %590 = vmatpush1.msra.mxu0 0.0
        %591 = vmatprep.subr.mxu0 0.0
        %592 = vmatpush1.msra.mxu0 0.0
        %593 = vmatprep.subr.mxu0 0.0
        %594 = vmatpush1.msra.mxu0 0.0
        %595 = vmatprep.subr.mxu0 0.0
        %596 = vmatpush1.msra.mxu0 0.0
        %597 = vmatprep.subr.mxu0 0.0
        %598 = vmatpush1.msra.mxu0 0.0
        %599 = vmatprep.subr.mxu0 0.0
        %600 = vmatpush1.msra.mxu0 0.0
        %601 = vmatprep.subr.mxu0 0.0
        %602 = vmatpush1.msra.mxu0 0.0
        %603 = vmatprep.subr.mxu0 0.0
        %604 = vmatpush1.msra.mxu0 0.0
        %605 = vmatprep.subr.mxu0 0.0
        %606 = vmatpush1.msra.mxu0 %v569
        %607 = vmatprep.subr.mxu0 0.0
        %608 = vmatpush1.msra.mxu0 %v568
        %609 = vmatprep.subr.mxu0 0.0
        %610 = vmatpush1.msra.mxu0 %v567
        %611 = vmatprep.subr.mxu0 0.0
        %612 = vmatpush1.msra.mxu0 %v566
        %613 = vmatprep.subr.mxu0 0.0
        %614 = vmatpush2.msra.mxu0 0.0
        %615 = vmatprep.subr.mxu0 0.0
        %616 = vmatpush2.msra.mxu0 0.0
        %617 = vmatprep.subr.mxu0 0.0
        %618 = vmatpush2.msra.mxu0 0.0
        %619 = vmatprep.subr.mxu0 0.0
        %620 = vmatpush2.msra.mxu0 0.0
        %621 = vmatprep.subr.mxu0 0.0
        %622 = vmatpush2.msra.mxu0 0.0
        %623 = vmatprep.subr.mxu0 0.0
        %624 = vmatpush2.msra.mxu0 0.0
        %625 = vmatprep.subr.mxu0 0.0
        %626 = vmatpush2.msra.mxu0 0.0
        %627 = vmatprep.subr.mxu0 0.0
        %628 = vmatpush2.msra.mxu0 0.0
        %629 = vmatprep.subr.mxu0 0.0
        %630 = vmatpush2.msra.mxu0 0.0
        %631 = vmatprep.subr.mxu0 0.0
        %632 = vmatpush2.msra.mxu0 0.0
        %633 = vmatprep.subr.mxu0 0.0
        %634 = vmatpush2.msra.mxu0 0.0
        %635 = vmatprep.subr.mxu0 0.0
        %636 = vmatpush2.msra.mxu0 0.0
        %637 = vmatprep.subr.mxu0 0.0
        %638 = vmatpush2.msra.mxu0 0.0
        %639 = vmatprep.subr.mxu0 0.0
        %640 = vmatpush2.msra.mxu0 0.0
        %641 = vmatprep.subr.mxu0 0.0
        %642 = vmatpush2.msra.mxu0 0.0
        %643 = vmatprep.subr.mxu0 0.0
        %644 = vmatpush2.msra.mxu0 0.0
        %645 = vmatprep.mubr.f32.mxu0 0.0
        %646 = vmatmul.mubr.f32.gmra.mxu0 %v579
        %v647 = vpop.f32.mrf.mxu0
        %v648 = vadd.f32 %v575, %v647
        %v649 = vpop.f32.mrf.mxu0
        %650 = vdwg.mxu0
        %vm651 = vcmask 130048
        %652 = vst.msk [vmem:[#allocation2] sm:$0xff] %vm651, %v648
        %654 = vrot.lane.b32.xlu0 %v648, 112
        %v655 = vpop.permute.xlu0 %654
        %s657 = scalar_lea.vmem [#allocation2], 8
        %658 = vst.msk [vmem:[%s657] sm:$0xff] %vm651, %v655
        %v659 = vld [vmem:[#allocation2] sm:$0xff]
        %v660 = vld [vmem:[#allocation2 + $0x8] sm:$0xff]
        %v661 = vld [vmem:[#allocation3] sm:$0xff]
        %v662 = vld [vmem:[#allocation3 + $0x8] sm:$0xff]
        %v663 = vld [vmem:[#allocation4] sm:$0xff]
        %v664 = vld [vmem:[#allocation4 + $0x8] sm:$0xff]
        %v666 = vsel %vm651, %v659, 0
        %v669 = vsel %vm651, %v661, 0
        %671 = vmatprep.subr.mxu0 0.0
        %672 = vmatpush1.xpose.msra.mxu0 0.0
        %673 = vmatprep.subr.mxu0 0.0
        %674 = vmatpush1.xpose.msra.mxu0 0.0
        %675 = vmatprep.subr.mxu0 0.0
        %676 = vmatpush1.xpose.msra.mxu0 0.0
        %677 = vmatprep.subr.mxu0 0.0
        %678 = vmatpush1.xpose.msra.mxu0 0.0
        %679 = vmatprep.subr.mxu0 0.0
        %680 = vmatpush1.xpose.msra.mxu0 0.0
        %681 = vmatprep.subr.mxu0 0.0
        %682 = vmatpush1.xpose.msra.mxu0 0.0
        %683 = vmatprep.subr.mxu0 0.0
        %684 = vmatpush1.xpose.msra.mxu0 0.0
        %685 = vmatprep.subr.mxu0 0.0
        %686 = vmatpush1.xpose.msra.mxu0 0.0
        %687 = vmatprep.subr.mxu0 0.0
        %688 = vmatpush1.xpose.msra.mxu0 0.0
        %689 = vmatprep.subr.mxu0 0.0
        %690 = vmatpush1.xpose.msra.mxu0 0.0
        %691 = vmatprep.subr.mxu0 0.0
        %692 = vmatpush1.xpose.msra.mxu0 0.0
        %693 = vmatprep.subr.mxu0 0.0
        %694 = vmatpush1.xpose.msra.mxu0 0.0
        %695 = vmatprep.subr.mxu0 0.0
        %696 = vmatpush1.xpose.msra.mxu0 0.0
        %697 = vmatprep.subr.mxu0 0.0
        %698 = vmatpush1.xpose.msra.mxu0 0.0
        %699 = vmatprep.subr.mxu0 0.0
        %700 = vmatpush1.xpose.msra.mxu0 0.0
        %701 = vmatprep.subr.mxu0 0.0
        %702 = vmatpush1.xpose.msra.mxu0 %v669
        %703 = vmatprep.subr.mxu0 0.0
        %704 = vmatpush2.xpose.msra.mxu0 0.0
        %705 = vmatprep.subr.mxu0 0.0
        %706 = vmatpush2.xpose.msra.mxu0 0.0
        %707 = vmatprep.subr.mxu0 0.0
        %708 = vmatpush2.xpose.msra.mxu0 0.0
        %709 = vmatprep.subr.mxu0 0.0
        %710 = vmatpush2.xpose.msra.mxu0 0.0
        %711 = vmatprep.subr.mxu0 0.0
        %712 = vmatpush2.xpose.msra.mxu0 0.0
        %713 = vmatprep.subr.mxu0 0.0
        %714 = vmatpush2.xpose.msra.mxu0 0.0
        %715 = vmatprep.subr.mxu0 0.0
        %716 = vmatpush2.xpose.msra.mxu0 0.0
        %717 = vmatprep.subr.mxu0 0.0
        %718 = vmatpush2.xpose.msra.mxu0 0.0
        %719 = vmatprep.subr.mxu0 0.0
        %720 = vmatpush2.xpose.msra.mxu0 0.0
        %721 = vmatprep.subr.mxu0 0.0
        %722 = vmatpush2.xpose.msra.mxu0 0.0
        %723 = vmatprep.subr.mxu0 0.0
        %724 = vmatpush2.xpose.msra.mxu0 0.0
        %725 = vmatprep.subr.mxu0 0.0
        %726 = vmatpush2.xpose.msra.mxu0 0.0
        %727 = vmatprep.subr.mxu0 0.0
        %728 = vmatpush2.xpose.msra.mxu0 0.0
        %729 = vmatprep.subr.mxu0 0.0
        %730 = vmatpush2.xpose.msra.mxu0 0.0
        %731 = vmatprep.subr.mxu0 0.0
        %732 = vmatpush2.xpose.msra.mxu0 0.0
        %733 = vmatprep.subr.mxu0 0.0
        %734 = vmatpush2.xpose.msra.mxu0 0.0
        %735 = vmatprep.mubr.f32.mxu0 0.0
        %736 = vmatmul.mubr.f32.gmra.mxu0 %v666
        %v737 = vpop.f32.mrf.mxu0
        %v738 = vadd.f32 0.0, %v737
        %v739 = vpop.f32.mrf.mxu0
        %740 = vdwg.mxu0
        %v742 = vsel %vm651, %v660, 0
        %v745 = vsel %vm651, %v662, 0
        %747 = vmatprep.subr.mxu0 0.0
        %748 = vmatpush1.xpose.msra.mxu0 0.0
        %749 = vmatprep.subr.mxu0 0.0
        %750 = vmatpush1.xpose.msra.mxu0 0.0
        %751 = vmatprep.subr.mxu0 0.0
        %752 = vmatpush1.xpose.msra.mxu0 0.0
        %753 = vmatprep.subr.mxu0 0.0
        %754 = vmatpush1.xpose.msra.mxu0 0.0
        %755 = vmatprep.subr.mxu0 0.0
        %756 = vmatpush1.xpose.msra.mxu0 0.0
        %757 = vmatprep.subr.mxu0 0.0
        %758 = vmatpush1.xpose.msra.mxu0 0.0
        %759 = vmatprep.subr.mxu0 0.0
        %760 = vmatpush1.xpose.msra.mxu0 0.0
        %761 = vmatprep.subr.mxu0 0.0
        %762 = vmatpush1.xpose.msra.mxu0 0.0
        %763 = vmatprep.subr.mxu0 0.0
        %764 = vmatpush1.xpose.msra.mxu0 0.0
        %765 = vmatprep.subr.mxu0 0.0
        %766 = vmatpush1.xpose.msra.mxu0 0.0
        %767 = vmatprep.subr.mxu0 0.0
        %768 = vmatpush1.xpose.msra.mxu0 0.0
        %769 = vmatprep.subr.mxu0 0.0
        %770 = vmatpush1.xpose.msra.mxu0 0.0
        %771 = vmatprep.subr.mxu0 0.0
        %772 = vmatpush1.xpose.msra.mxu0 0.0
        %773 = vmatprep.subr.mxu0 0.0
        %774 = vmatpush1.xpose.msra.mxu0 0.0
        %775 = vmatprep.subr.mxu0 0.0
        %776 = vmatpush1.xpose.msra.mxu0 0.0
        %777 = vmatprep.subr.mxu0 0.0
        %778 = vmatpush1.xpose.msra.mxu0 %v745
        %779 = vmatprep.subr.mxu0 0.0
        %780 = vmatpush2.xpose.msra.mxu0 0.0
        %781 = vmatprep.subr.mxu0 0.0
        %782 = vmatpush2.xpose.msra.mxu0 0.0
        %783 = vmatprep.subr.mxu0 0.0
        %784 = vmatpush2.xpose.msra.mxu0 0.0
        %785 = vmatprep.subr.mxu0 0.0
        %786 = vmatpush2.xpose.msra.mxu0 0.0
        %787 = vmatprep.subr.mxu0 0.0
        %788 = vmatpush2.xpose.msra.mxu0 0.0
        %789 = vmatprep.subr.mxu0 0.0
        %790 = vmatpush2.xpose.msra.mxu0 0.0
        %791 = vmatprep.subr.mxu0 0.0
        %792 = vmatpush2.xpose.msra.mxu0 0.0
        %793 = vmatprep.subr.mxu0 0.0
        %794 = vmatpush2.xpose.msra.mxu0 0.0
        %795 = vmatprep.subr.mxu0 0.0
        %796 = vmatpush2.xpose.msra.mxu0 0.0
        %797 = vmatprep.subr.mxu0 0.0
        %798 = vmatpush2.xpose.msra.mxu0 0.0
        %799 = vmatprep.subr.mxu0 0.0
        %800 = vmatpush2.xpose.msra.mxu0 0.0
        %801 = vmatprep.subr.mxu0 0.0
        %802 = vmatpush2.xpose.msra.mxu0 0.0
        %803 = vmatprep.subr.mxu0 0.0
        %804 = vmatpush2.xpose.msra.mxu0 0.0
        %805 = vmatprep.subr.mxu0 0.0
        %806 = vmatpush2.xpose.msra.mxu0 0.0
        %807 = vmatprep.subr.mxu0 0.0
        %808 = vmatpush2.xpose.msra.mxu0 0.0
        %809 = vmatprep.subr.mxu0 0.0
        %810 = vmatpush2.xpose.msra.mxu0 0.0
        %811 = vmatprep.mubr.f32.mxu0 0.0
        %812 = vmatmul.mubr.f32.gmra.mxu0 %v742
        %v813 = vpop.f32.mrf.mxu0
        %v814 = vadd.f32 0.0, %v813
        %v815 = vpop.f32.mrf.mxu0
        %816 = vdwg.mxu0
        %v817 = vmul.f32 %v738, 0.25
        %v818 = vmul.f32 %v814, 0.25
        %vm819 = vcmask 64512
        %v820 = vsel %vm819, %v817, -inf
        %821 = vmax.xlane.f32.xlu0 %v820
        %v822 = vpop.xlane.xlu0 %821
        %v823 = vsel %vm819, %v818, -inf
        %824 = vmax.xlane.f32.xlu0 %v823
        %v825 = vpop.xlane.xlu0 %824
        %v826 = vsub.f32 %v817, %v822
        %v827 = vsub.f32 %v818, %v825
        %v828 = vmul.f32 %v826, 1.442695
        %v829 = vpow.pop %v828
        %v830 = vmul.f32 %v827, 1.442695
        %v831 = vpow.pop %v830
        %v832 = vsel %vm819, %v829, 0.0
        %833 = vadd.xlane.f32.xlu0 %v832
        %v834 = vpop.xlane.xlu0 %833
        %v835 = vsel %vm819, %v831, 0.0
        %836 = vadd.xlane.f32.xlu0 %v835
        %v837 = vpop.xlane.xlu0 %836
        %v838 = vrcp.pop %v834
        %v839 = vrcp.pop %v837
        %v840 = vmul.f32 %v829, %v838
        %v841 = vmul.f32 %v831, %v839
        %842 = vst.msk [vmem:[%s450] sm:$0xff] %vm819, %v840
        %843 = vst.msk [vmem:[%s450 + $0x8] sm:$0xff] %vm819, %v841
        %v845 = vsel %vm819, %v840, 0
        %847 = vmatprep.subr.mxu0 0.0
        %848 = vmatpush1.msra.mxu0 0.0
        %849 = vmatprep.subr.mxu0 0.0
        %850 = vmatpush1.msra.mxu0 0.0
        %851 = vmatprep.subr.mxu0 0.0
        %852 = vmatpush1.msra.mxu0 0.0
        %853 = vmatprep.subr.mxu0 0.0
        %854 = vmatpush1.msra.mxu0 0.0
        %855 = vmatprep.subr.mxu0 0.0
        %856 = vmatpush1.msra.mxu0 0.0
        %857 = vmatprep.subr.mxu0 0.0
        %858 = vmatpush1.msra.mxu0 0.0
        %859 = vmatprep.subr.mxu0 0.0
        %860 = vmatpush1.msra.mxu0 0.0
        %861 = vmatprep.subr.mxu0 0.0
        %862 = vmatpush1.msra.mxu0 0.0
        %863 = vmatprep.subr.mxu0 0.0
        %864 = vmatpush1.msra.mxu0 0.0
        %865 = vmatprep.subr.mxu0 0.0
        %866 = vmatpush1.msra.mxu0 0.0
        %867 = vmatprep.subr.mxu0 0.0
        %868 = vmatpush1.msra.mxu0 0.0
        %869 = vmatprep.subr.mxu0 0.0
        %870 = vmatpush1.msra.mxu0 0.0
        %871 = vmatprep.subr.mxu0 0.0
        %872 = vmatpush1.msra.mxu0 0.0
        %873 = vmatprep.subr.mxu0 0.0
        %874 = vmatpush1.msra.mxu0 0.0
        %875 = vmatprep.subr.mxu0 0.0
        %876 = vmatpush1.msra.mxu0 0.0
        %877 = vmatprep.subr.mxu0 0.0
        %878 = vmatpush1.msra.mxu0 %v663
        %879 = vmatprep.subr.mxu0 0.0
        %880 = vmatpush2.msra.mxu0 0.0
        %881 = vmatprep.subr.mxu0 0.0
        %882 = vmatpush2.msra.mxu0 0.0
        %883 = vmatprep.subr.mxu0 0.0
        %884 = vmatpush2.msra.mxu0 0.0
        %885 = vmatprep.subr.mxu0 0.0
        %886 = vmatpush2.msra.mxu0 0.0
        %887 = vmatprep.subr.mxu0 0.0
        %888 = vmatpush2.msra.mxu0 0.0
        %889 = vmatprep.subr.mxu0 0.0
        %890 = vmatpush2.msra.mxu0 0.0
        %891 = vmatprep.subr.mxu0 0.0
        %892 = vmatpush2.msra.mxu0 0.0
        %893 = vmatprep.subr.mxu0 0.0
        %894 = vmatpush2.msra.mxu0 0.0
        %895 = vmatprep.subr.mxu0 0.0
        %896 = vmatpush2.msra.mxu0 0.0
        %897 = vmatprep.subr.mxu0 0.0
        %898 = vmatpush2.msra.mxu0 0.0
        %899 = vmatprep.subr.mxu0 0.0
        %900 = vmatpush2.msra.mxu0 0.0
        %901 = vmatprep.subr.mxu0 0.0
        %902 = vmatpush2.msra.mxu0 0.0
        %903 = vmatprep.subr.mxu0 0.0
        %904 = vmatpush2.msra.mxu0 0.0
        %905 = vmatprep.subr.mxu0 0.0
        %906 = vmatpush2.msra.mxu0 0.0
        %907 = vmatprep.subr.mxu0 0.0
        %908 = vmatpush2.msra.mxu0 0.0
        %909 = vmatprep.subr.mxu0 0.0
        %910 = vmatpush2.msra.mxu0 0.0
        %911 = vmatprep.mubr.f32.mxu0 0.0
        %912 = vmatmul.mubr.f32.gmra.mxu0 %v845
        %v913 = vpop.f32.mrf.mxu0
        %v914 = vadd.f32 0.0, %v913
        %v915 = vpop.f32.mrf.mxu0
        %916 = vdwg.mxu0
        %v918 = vsel %vm819, %v841, 0
        %920 = vmatprep.subr.mxu0 0.0
        %921 = vmatpush1.msra.mxu0 0.0
        %922 = vmatprep.subr.mxu0 0.0
        %923 = vmatpush1.msra.mxu0 0.0
        %924 = vmatprep.subr.mxu0 0.0
        %925 = vmatpush1.msra.mxu0 0.0
        %926 = vmatprep.subr.mxu0 0.0
        %927 = vmatpush1.msra.mxu0 0.0
        %928 = vmatprep.subr.mxu0 0.0
        %929 = vmatpush1.msra.mxu0 0.0
        %930 = vmatprep.subr.mxu0 0.0
        %931 = vmatpush1.msra.mxu0 0.0
        %932 = vmatprep.subr.mxu0 0.0
        %933 = vmatpush1.msra.mxu0 0.0
        %934 = vmatprep.subr.mxu0 0.0
        %935 = vmatpush1.msra.mxu0 0.0
        %936 = vmatprep.subr.mxu0 0.0
        %937 = vmatpush1.msra.mxu0 0.0
        %938 = vmatprep.subr.mxu0 0.0
        %939 = vmatpush1.msra.mxu0 0.0
        %940 = vmatprep.subr.mxu0 0.0
        %941 = vmatpush1.msra.mxu0 0.0
        %942 = vmatprep.subr.mxu0 0.0
        %943 = vmatpush1.msra.mxu0 0.0
        %944 = vmatprep.subr.mxu0 0.0
        %945 = vmatpush1.msra.mxu0 0.0
        %946 = vmatprep.subr.mxu0 0.0
        %947 = vmatpush1.msra.mxu0 0.0
        %948 = vmatprep.subr.mxu0 0.0
        %949 = vmatpush1.msra.mxu0 0.0
        %950 = vmatprep.subr.mxu0 0.0
        %951 = vmatpush1.msra.mxu0 %v664
        %952 = vmatprep.subr.mxu0 0.0
        %953 = vmatpush2.msra.mxu0 0.0
        %954 = vmatprep.subr.mxu0 0.0
        %955 = vmatpush2.msra.mxu0 0.0
        %956 = vmatprep.subr.mxu0 0.0
        %957 = vmatpush2.msra.mxu0 0.0
        %958 = vmatprep.subr.mxu0 0.0
        %959 = vmatpush2.msra.mxu0 0.0
        %960 = vmatprep.subr.mxu0 0.0
        %961 = vmatpush2.msra.mxu0 0.0
        %962 = vmatprep.subr.mxu0 0.0
        %963 = vmatpush2.msra.mxu0 0.0
        %964 = vmatprep.subr.mxu0 0.0
        %965 = vmatpush2.msra.mxu0 0.0
        %966 = vmatprep.subr.mxu0 0.0
        %967 = vmatpush2.msra.mxu0 0.0
        %968 = vmatprep.subr.mxu0 0.0
        %969 = vmatpush2.msra.mxu0 0.0
        %970 = vmatprep.subr.mxu0 0.0
        %971 = vmatpush2.msra.mxu0 0.0
        %972 = vmatprep.subr.mxu0 0.0
        %973 = vmatpush2.msra.mxu0 0.0
        %974 = vmatprep.subr.mxu0 0.0
        %975 = vmatpush2.msra.mxu0 0.0
        %976 = vmatprep.subr.mxu0 0.0
        %977 = vmatpush2.msra.mxu0 0.0
        %978 = vmatprep.subr.mxu0 0.0
        %979 = vmatpush2.msra.mxu0 0.0
        %980 = vmatprep.subr.mxu0 0.0
        %981 = vmatpush2.msra.mxu0 0.0
        %982 = vmatprep.subr.mxu0 0.0
        %983 = vmatpush2.msra.mxu0 0.0
        %984 = vmatprep.mubr.f32.mxu0 0.0
        %985 = vmatmul.mubr.f32.gmra.mxu0 %v918
        %v986 = vpop.f32.mrf.mxu0
        %v987 = vadd.f32 0.0, %v986
        %v988 = vpop.f32.mrf.mxu0
        %989 = vdwg.mxu0
        %990 = vst.msk [vmem:[#allocation5] sm:$0xff] %vm651, %v914
        %992 = vrot.lane.b32.xlu0 %v987, 16
        %v993 = vpop.permute.xlu0 %992
        %vm995 = vcmask 261248
        %996 = vst.msk [vmem:[#allocation5] sm:$0xff] %vm995, %v993
        %v997 = vld [vmem:[#allocation5] sm:$0xff]
        %v998 = vld [vmem:[#allocation14] sm:$0xff]
        %v999 = vld [vmem:[#allocation14 + $0x8] sm:$0xff]
        %v1000 = vld [vmem:[#allocation14 + $0x10] sm:$0xff]
        %v1001 = vld [vmem:[#allocation14 + $0x18] sm:$0xff]
        %v1002 = vld [vmem:[%s7] sm:$0x1]
        %v1004 = vlaneseq
        %v1005 = vshrl.u32 %v1004, 7
        %v1006 = vsub.s32 0, %v1005
        %v1007 = vrot.slane %v1002, %v1006
        %v1010 = vsel %vm577, %v997, 0
        %1012 = vmatprep.subr.mxu0 0.0
        %1013 = vmatpush1.msra.mxu0 0.0
        %1014 = vmatprep.subr.mxu0 0.0
        %1015 = vmatpush1.msra.mxu0 0.0
        %1016 = vmatprep.subr.mxu0 0.0
        %1017 = vmatpush1.msra.mxu0 0.0
        %1018 = vmatprep.subr.mxu0 0.0
        %1019 = vmatpush1.msra.mxu0 0.0
        %1020 = vmatprep.subr.mxu0 0.0
        %1021 = vmatpush1.msra.mxu0 0.0
        %1022 = vmatprep.subr.mxu0 0.0
        %1023 = vmatpush1.msra.mxu0 0.0
        %1024 = vmatprep.subr.mxu0 0.0
        %1025 = vmatpush1.msra.mxu0 0.0
        %1026 = vmatprep.subr.mxu0 0.0
        %1027 = vmatpush1.msra.mxu0 0.0
        %1028 = vmatprep.subr.mxu0 0.0
        %1029 = vmatpush1.msra.mxu0 0.0
        %1030 = vmatprep.subr.mxu0 0.0
        %1031 = vmatpush1.msra.mxu0 0.0
        %1032 = vmatprep.subr.mxu0 0.0
        %1033 = vmatpush1.msra.mxu0 0.0
        %1034 = vmatprep.subr.mxu0 0.0
        %1035 = vmatpush1.msra.mxu0 0.0
        %1036 = vmatprep.subr.mxu0 0.0
        %1037 = vmatpush1.msra.mxu0 %v1001
        %1038 = vmatprep.subr.mxu0 0.0
        %1039 = vmatpush1.msra.mxu0 %v1000
        %1040 = vmatprep.subr.mxu0 0.0
        %1041 = vmatpush1.msra.mxu0 %v999
        %1042 = vmatprep.subr.mxu0 0.0
        %1043 = vmatpush1.msra.mxu0 %v998
        %1044 = vmatprep.subr.mxu0 0.0
        %1045 = vmatpush2.msra.mxu0 0.0
        %1046 = vmatprep.subr.mxu0 0.0
        %1047 = vmatpush2.msra.mxu0 0.0
        %1048 = vmatprep.subr.mxu0 0.0
        %1049 = vmatpush2.msra.mxu0 0.0
        %1050 = vmatprep.subr.mxu0 0.0
        %1051 = vmatpush2.msra.mxu0 0.0
        %1052 = vmatprep.subr.mxu0 0.0
        %1053 = vmatpush2.msra.mxu0 0.0
        %1054 = vmatprep.subr.mxu0 0.0
        %1055 = vmatpush2.msra.mxu0 0.0
        %1056 = vmatprep.subr.mxu0 0.0
        %1057 = vmatpush2.msra.mxu0 0.0
        %1058 = vmatprep.subr.mxu0 0.0
        %1059 = vmatpush2.msra.mxu0 0.0
        %1060 = vmatprep.subr.mxu0 0.0
        %1061 = vmatpush2.msra.mxu0 0.0
        %1062 = vmatprep.subr.mxu0 0.0
        %1063 = vmatpush2.msra.mxu0 0.0
        %1064 = vmatprep.subr.mxu0 0.0
        %1065 = vmatpush2.msra.mxu0 0.0
        %1066 = vmatprep.subr.mxu0 0.0
        %1067 = vmatpush2.msra.mxu0 0.0
        %1068 = vmatprep.subr.mxu0 0.0
        %1069 = vmatpush2.msra.mxu0 0.0
        %1070 = vmatprep.subr.mxu0 0.0
        %1071 = vmatpush2.msra.mxu0 0.0
        %1072 = vmatprep.subr.mxu0 0.0
        %1073 = vmatpush2.msra.mxu0 0.0
        %1074 = vmatprep.subr.mxu0 0.0
        %1075 = vmatpush2.msra.mxu0 0.0
        %1076 = vmatprep.mubr.f32.mxu0 0.0
        %1077 = vmatmul.mubr.f32.gmra.mxu0 %v1010
        %v1078 = vpop.f32.mrf.mxu0
        %v1079 = vadd.f32 %v1007, %v1078
        %v1080 = vpop.f32.mrf.mxu0
        %1081 = vdwg.mxu0
        %1082 = vst.msk [vmem:[%s457] sm:$0xff] %vm577, %v1079
        %s1083 = sand.u32 %s236, 1
        %s1084 = scalar_lea.sflag [#allocation8], %s1083
        %s1085 = sand.u32 %s236, 1
        %s1086 = smul.addr %s1085, 16
        %s1087 = scalar_lea.vmem [#allocation15], %s1086
        %s1088 = sand.u32 %s264, 1
        %s1089 = scalar_lea.sflag [#allocation17], %s1088
        %s1090 = sand.u32 %s264, 1
        %s1091 = smul.addr %s1090, 8
        %s1092 = scalar_lea.vmem [#allocation16], %s1091
        // Predicated region
        $region77: #{tpu_custom_call.1} parent=51 // pred_check
          %p1093 = pneg %p246
        $region78: #{tpu_custom_call.1} parent=51 // pred_check_branch
          %1095 = sbr.rel (%p1093) target = $region80
        $region79: #{tpu_custom_call.1} parent=51 // pred_region
          %s1097 = ssub.s32 256, 256
          %1098 = vsyncadd %s1084, %s1097
          %s1099 = smul.addr %s38, 2
          %s1100 = sadd.s32 %s39, %s1099
          %s1101 = smul.addr %s1100, 128
          %s1102 = scalar_lea.hbm %s8, %s1101
          %s1103 = sshll.u32 %s1087, 4
          %s1104 = int_to_ptr.vmem [resolvable:$true] %s1103
          %1109 = dma.vmem_to_hbm [thread:$0]  %s1104, 256, %s1102, %s1084, 128, 128, 8
        $region80: #{tpu_custom_call.1} parent=51 // pred_fallthru
          _
        // Predicated region
        $region81: #{tpu_custom_call.1} parent=51 // pred_check
          %p1110 = pneg %p274
        $region82: #{tpu_custom_call.1} parent=51 // pred_check_branch
          %1112 = sbr.rel (%p1110) target = $region84
        $region83: #{tpu_custom_call.1} parent=51 // pred_region
          %s1114 = ssub.s32 128, 128
          %1115 = vsyncadd %s1089, %s1114
          %s1116 = sadd.s32 %s39, %s38
          %s1117 = smul.addr %s1116, 128
          %s1118 = scalar_lea.hbm %s9, %s1117
          %s1120 = sshll.u32 %s1092, 4
          %s1121 = int_to_ptr.vmem [resolvable:$true] %s1120
          %1123 = dma.vmem_to_hbm [thread:$0]  %s1121, 128, %s1118, %s1089
        $region84: #{tpu_custom_call.1} parent=51 // pred_fallthru
          _
      $region52: #{tpu_custom_call.1} parent=5 // pred_fallthru
        _
      %p1124 = scmp.le.s32.totalorder 2, %s29
      // Predicated region
      $region85: #{tpu_custom_call.1} parent=5 // pred_check
        %p1125 = pneg %p1124
      $region86: #{tpu_custom_call.1} parent=5 // pred_check_branch
        %1127 = sbr.rel (%p1125) target = $region88
      $region87: #{tpu_custom_call.1} parent=5 // pred_region
        %s1128 = ssub.s32 %s29, 2
        // Predicated region
        $region89: #{tpu_custom_call.1} parent=87 // pred_check
          %p1129 = pneg %p252
        $region90: #{tpu_custom_call.1} parent=87 // pred_check_branch
          %1131 = sbr.rel (%p1129) target = $region92
        $region91: #{tpu_custom_call.1} parent=87 // pred_region
          %s1132 = sand.u32 %s237, 1
          %s1133 = scalar_lea.sflag [#allocation8], %s1132
          %s1134 = sand.u32 %s237, 1
          %s1135 = smul.addr %s1134, 16
          %s1136 = scalar_lea.vmem [#allocation15], %s1135
          %1137 = dma.done %s1133, 256
        $region92: #{tpu_custom_call.1} parent=87 // pred_fallthru
          _
        // Predicated region
        $region93: #{tpu_custom_call.1} parent=87 // pred_check
          %p1138 = pneg %p280
        $region94: #{tpu_custom_call.1} parent=87 // pred_check_branch
          %1140 = sbr.rel (%p1138) target = $region96
        $region95: #{tpu_custom_call.1} parent=87 // pred_region
          %s1141 = sand.u32 %s265, 1
          %s1142 = scalar_lea.sflag [#allocation17], %s1141
          %s1143 = sand.u32 %s265, 1
          %s1144 = smul.addr %s1143, 8
          %s1145 = scalar_lea.vmem [#allocation16], %s1144
          %1146 = dma.done %s1142, 128
        $region96: #{tpu_custom_call.1} parent=87 // pred_fallthru
          _
      $region88: #{tpu_custom_call.1} parent=5 // pred_fallthru
        _
    $region6: #{tpu_custom_call.1} parent=1 // loop_footer
      %s33 = sadd.s32 1, %s29
    $region7: #{tpu_custom_call.1} parent=1 // loop_footer_branch
      %28 = sbr.rel target = $region3
    $region8: #{tpu_custom_call.1} parent=1 // loop_exit
      _
    %1147 = vsyncpa [#allocation7], 1
    %s1148 = scalar_lea.sflag [#allocation7], 1
    %1149 = vsyncpa %s1148, 1
    %1150 = vsyncpa [#allocation10], 1
    %s1151 = scalar_lea.sflag [#allocation10], 1
    %1152 = vsyncpa %s1151, 1
    %1153 = vsyncpa [#allocation13], 1
    %1154 = vsyncpa [#allocation8], 1
    %s1155 = scalar_lea.sflag [#allocation8], 1
    %1156 = vsyncpa %s1155, 1
    %1157 = vsyncpa [#allocation17], 1
    %s1158 = scalar_lea.sflag [#allocation17], 1
    %1159 = vsyncpa %s1158, 1

// kernel: tpu_custom_call.1
$region0: #{tpu_custom_call.1}
  #allocation0 [shape = 'u32[]', space=smem, size = 0x4, offset = 0x4, fixed_abs, tag = 'smem constant byte address 0x4 - core index']
  #allocation1 [shape = 'u32[144,128]{1,0:T(1,128)}', space=vmem, size = 0x12000, scoped, tag = 'internal scratch']
  #allocation2 [shape = 'f32[2,8,16]{2,1,0:T(8,128)}', space=vmem, size = 0x2000, scoped, tag = 'scratch operand']
  #allocation3 [shape = 'f32[2,8,16]{2,1,0:T(8,128)}', space=vmem, size = 0x2000, scoped, tag = 'scratch operand']
  #allocation4 [shape = 'f32[2,8,16]{2,1,0:T(8,128)}', space=vmem, size = 0x2000, scoped, tag = 'scratch operand']
  #allocation5 [shape = 'f32[8,32]{1,0:T(8,128)}', space=vmem, size = 0x1000, scoped, tag = 'scratch operand']
  %s0 = inlined_call_operand.hbm [shape: f32[2,8,32], index: 0, kind: input, shape index: {}]
  %s1 = inlined_call_operand.hbm [shape: f32[2,8,32], index: 1, kind: input, shape index: {}]
  %s2 = inlined_call_operand.hbm [shape: f32[32,32], index: 2, kind: input, shape index: {}]
  %s3 = inlined_call_operand.vmem [shape: f32[1,32], index: 3, kind: input, shape index: {}]
  %s4 = inlined_call_operand.hbm [shape: f32[32,64], index: 4, kind: input, shape index: {}]
  %s5 = inlined_call_operand.vmem [shape: f32[1,64], index: 5, kind: input, shape index: {}]
  %s6 = inlined_call_operand.hbm [shape: f32[32,32], index: 6, kind: input, shape index: {}]
  %s7 = inlined_call_operand.vmem [shape: f32[1,32], index: 7, kind: input, shape index: {}]
  %s8 = inlined_call_operand.hbm [shape: f32[2,2,8,8], index: 8, kind: output, shape index: {0}]
  %s9 = inlined_call_operand.hbm [shape: f32[2,8,32], index: 9, kind: output, shape index: {1}]
  %10 = xla_tuple %s8, %s9
  %s11 = sld [smem:[#allocation0]]
  $region97: #{tpu_custom_call.1} parent=0
    _
  %s13 = ssub.s32 1, %s11
  %s14 = scalar_select 0, %s13, %s11
  $region1: #{tpu_custom_call.1} parent=0
    #allocation6 [shape = 'u8[8192]{0}', space=vmem, size = 0x2000, scoped, tag = 'input window, operand 0']
    #allocation7 [shape = 's32[2]{0}', space=sflag, size = 0x8, scoped, tag = 'scoped memory for tpu_custom_call.1']
    #allocation8 [shape = 's32[2]{0}', space=sflag, size = 0x8, scoped, tag = 'scoped memory for tpu_custom_call.1']
    #allocation9 [shape = 'u8[8192]{0}', space=vmem, size = 0x2000, scoped, tag = 'input window, operand 1']
    #allocation10 [shape = 's32[2]{0}', space=sflag, size = 0x8, scoped, tag = 'scoped memory for tpu_custom_call.1']
    #allocation11 [shape = 'u8[16384]{0}', space=vmem, size = 0x4000, scoped, tag = 'input window, operand 2, single buffered']
    #allocation12 [shape = 'u8[16384]{0}', space=vmem, size = 0x4000, scoped, tag = 'input window, operand 4, single buffered']
    #allocation13 [shape = 's32[1]{0}', space=sflag, size = 0x4, scoped, tag = 'scoped memory for tpu_custom_call.1']
    #allocation14 [shape = 'u8[16384]{0}', space=vmem, size = 0x4000, scoped, tag = 'input window, operand 6, single buffered']
    #allocation15 [shape = 'u8[16384]{0}', space=vmem, size = 0x4000, scoped, tag = 'output window, operand 0']
    #allocation16 [shape = 'u8[8192]{0}', space=vmem, size = 0x2000, scoped, tag = 'output window, operand 1']
    #allocation17 [shape = 's32[2]{0}', space=sflag, size = 0x8, scoped, tag = 'scoped memory for tpu_custom_call.1']
    %15 = vsyncpa [#allocation7], 0
    %s16 = scalar_lea.sflag [#allocation7], 1
    %17 = vsyncpa %s16, 0
    %18 = vsyncpa [#allocation10], 0
    %s19 = scalar_lea.sflag [#allocation10], 1
    %20 = vsyncpa %s19, 0
    %21 = vsyncpa [#allocation13], 0
    %22 = vsyncpa [#allocation8], 0
    %s23 = scalar_lea.sflag [#allocation8], 1
    %24 = vsyncpa %s23, 0
    %25 = vsyncpa [#allocation17], 0
    %s26 = scalar_lea.sflag [#allocation17], 1
    %27 = vsyncpa %s26, 0
    loop: start=0, step=1, limit=4
    $region2: #{tpu_custom_call.1} parent=1 // loop_pre_header
      _
    $region3: #{tpu_custom_call.1} parent=1 // loop_header
      %s29 = sphi 0, %s33
      %p30 = scmp.ge.s32.totalorder %s29, 4
      %s36 = sphi 0, %s48
      %s37 = sphi 0, %s44
      %s38 = sphi 0, %s36
      %s39 = sphi 0, %s37
      %s40 = sphi 0, %s38
      %s41 = sphi 0, %s39
      %s53 = sphi 0, %s55
      %s56 = sphi 0, %s53
      %s57 = sphi 0, %s56
      %s73 = sphi 0, %s57
      %s79 = sphi 0, %s81
      %s82 = sphi 0, %s79
      %s83 = sphi 0, %s82
      %s99 = sphi 0, %s83
      %s103 = sphi 0, %s103
      %s105 = sphi 0, %s103
      %s106 = sphi 0, %s105
      %s120 = sphi 0, %s106
      %s124 = sphi 0, %s124
      %s126 = sphi 0, %s124
      %s127 = sphi 0, %s126
      %s141 = sphi 0, %s127
      %s145 = sphi 0, %s145
      %s147 = sphi 0, %s145
      %s148 = sphi 0, %s147
      %s162 = sphi 0, %s148
      %s166 = sphi 0, %s166
      %s168 = sphi 0, %s166
      %s169 = sphi 0, %s168
      %s183 = sphi 0, %s169
      %s187 = sphi 0, %s187
      %s189 = sphi 0, %s187
      %s190 = sphi 0, %s189
      %s204 = sphi 0, %s190
      %s208 = sphi 0, %s208
      %s210 = sphi 0, %s208
      %s211 = sphi 0, %s210
      %s225 = sphi 0, %s211
      %s233 = sphi 0, %s235
      %s236 = sphi 0, %s233
      %s237 = sphi 0, %s236
      %s253 = sphi 0, %s237
      %s261 = sphi 0, %s263
      %s264 = sphi 0, %s261
      %s265 = sphi 0, %s264
      %s281 = sphi 0, %s265
    $region4: #{tpu_custom_call.1} parent=1 // loop_header_branch
      %32 = sbr.rel (%p30) target = $region8
    $region5: #{tpu_custom_call.1} parent=1 // loop_body
      %s34 = ssub.s32 %s29, 1
      %s35 = ssub.s32 %s29, 2
      %s42 = sadd.s32 1, %s37
      %p43 = scmp.ge.s32.totalorder %s42, 1
      %s44 = scalar_select %p43, 0, %s42
      %s45 = sadd.s32 1, %s36
      %s46 = scalar_select %p43, %s45, %s36
      %p47 = scmp.ge.s32.totalorder %s46, 2
      %s48 = scalar_select %p47, 0, %s46
      %s49 = ssub.s32 %s36, %s48
      %s50 = ssub.s32 %s37, %s44
      %s51 = sor.u32 %s49, %s50
      %p52 = scmp.eq.s32.totalorder %s51, 0
      %s54 = sadd.s32 %s53, 1
      %s55 = scalar_select %p52, %s53, %s54
      %p58 = pneg %p52
      %p59 = scmp.eq.s32.totalorder %s29, 1
      %p60 = por %p58, %p59
      %p61 = scmp.ne.s32.totalorder %s53, %s56
      %p62 = scmp.eq.s32.totalorder %s29, 0
      %p63 = por %p61, %p62
      %p64 = scmp.ne.s32.totalorder %s53, %s56
      %p65 = scmp.eq.s32.totalorder %s34, 1
      %p66 = por %p64, %p65
      %p67 = scmp.ne.s32.totalorder %s56, %s57
      %p68 = scmp.eq.s32.totalorder %s34, 0
      %p69 = por %p67, %p68
      %p70 = scmp.ne.s32.totalorder %s56, %s57
      %p71 = scmp.eq.s32.totalorder %s35, 1
      %p72 = por %p70, %p71
      %p74 = scmp.ne.s32.totalorder %s57, %s73
      %p75 = scmp.eq.s32.totalorder %s35, 0
      %p76 = por %p74, %p75
      %s77 = ssub.s32 %s36, %s48
      %p78 = scmp.eq.s32.totalorder %s77, 0
      %s80 = sadd.s32 %s79, 1
      %s81 = scalar_select %p78, %s79, %s80
      %p84 = pneg %p78
      %p85 = scmp.eq.s32.totalorder %s29, 1
      %p86 = por %p84, %p85
      %p87 = scmp.ne.s32.totalorder %s79, %s82
      %p88 = scmp.eq.s32.totalorder %s29, 0
      %p89 = por %p87, %p88
      %p90 = scmp.ne.s32.totalorder %s79, %s82
      %p91 = scmp.eq.s32.totalorder %s34, 1
      %p92 = por %p90, %p91
      %p93 = scmp.ne.s32.totalorder %s82, %s83
      %p94 = scmp.eq.s32.totalorder %s34, 0
      %p95 = por %p93, %p94
      %p96 = scmp.ne.s32.totalorder %s82, %s83
      %p97 = scmp.eq.s32.totalorder %s35, 1
      %p98 = por %p96, %p97
      %p100 = scmp.ne.s32.totalorder %s83, %s99
      %p101 = scmp.eq.s32.totalorder %s35, 0
      %p102 = por %p100, %p101
      %s104 = sadd.s32 %s103, 1
      %p107 = scmp.eq.s32.totalorder %s29, 1
      %p108 = scmp.ne.s32.totalorder %s103, %s105
      %p109 = scmp.eq.s32.totalorder %s29, 0
      %p110 = por %p108, %p109
      %p111 = scmp.ne.s32.totalorder %s103, %s105
      %p112 = scmp.eq.s32.totalorder %s34, 1
      %p113 = por %p111, %p112
      %p114 = scmp.ne.s32.totalorder %s105, %s106
      %p115 = scmp.eq.s32.totalorder %s34, 0
      %p116 = por %p114, %p115
      %p117 = scmp.ne.s32.totalorder %s105, %s106
      %p118 = scmp.eq.s32.totalorder %s35, 1
      %p119 = por %p117, %p118
      %p121 = scmp.ne.s32.totalorder %s106, %s120
      %p122 = scmp.eq.s32.totalorder %s35, 0
      %p123 = por %p121, %p122
      %s125 = sadd.s32 %s124, 1
      %p128 = scmp.eq.s32.totalorder %s29, 1
      %p129 = scmp.ne.s32.totalorder %s124, %s126
      %p130 = scmp.eq.s32.totalorder %s29, 0
      %p131 = por %p129, %p130
      %p132 = scmp.ne.s32.totalorder %s124, %s126
      %p133 = scmp.eq.s32.totalorder %s34, 1
      %p134 = por %p132, %p133
      %p135 = scmp.ne.s32.totalorder %s126, %s127
      %p136 = scmp.eq.s32.totalorder %s34, 0
      %p137 = por %p135, %p136
      %p138 = scmp.ne.s32.totalorder %s126, %s127
      %p139 = scmp.eq.s32.totalorder %s35, 1
      %p140 = por %p138, %p139
      %p142 = scmp.ne.s32.totalorder %s127, %s141
      %p143 = scmp.eq.s32.totalorder %s35, 0
      %p144 = por %p142, %p143
      %s146 = sadd.s32 %s145, 1
      %p149 = scmp.eq.s32.totalorder %s29, 1
      %p150 = scmp.ne.s32.totalorder %s145, %s147
      %p151 = scmp.eq.s32.totalorder %s29, 0
      %p152 = por %p150, %p151
      %p153 = scmp.ne.s32.totalorder %s145, %s147
      %p154 = scmp.eq.s32.totalorder %s34, 1
      %p155 = por %p153, %p154
      %p156 = scmp.ne.s32.totalorder %s147, %s148
      %p157 = scmp.eq.s32.totalorder %s34, 0
      %p158 = por %p156, %p157
      %p159 = scmp.ne.s32.totalorder %s147, %s148
      %p160 = scmp.eq.s32.totalorder %s35, 1
      %p161 = por %p159, %p160
      %p163 = scmp.ne.s32.totalorder %s148, %s162
      %p164 = scmp.eq.s32.totalorder %s35, 0
      %p165 = por %p163, %p164
      %s167 = sadd.s32 %s166, 1
      %p170 = scmp.eq.s32.totalorder %s29, 1
      %p171 = scmp.ne.s32.totalorder %s166, %s168
      %p172 = scmp.eq.s32.totalorder %s29, 0
      %p173 = por %p171, %p172
      %p174 = scmp.ne.s32.totalorder %s166, %s168
      %p175 = scmp.eq.s32.totalorder %s34, 1
      %p176 = por %p174, %p175
      %p177 = scmp.ne.s32.totalorder %s168, %s169
      %p178 = scmp.eq.s32.totalorder %s34, 0
      %p179 = por %p177, %p178
      %p180 = scmp.ne.s32.totalorder %s168, %s169
      %p181 = scmp.eq.s32.totalorder %s35, 1
      %p182 = por %p180, %p181
      %p184 = scmp.ne.s32.totalorder %s169, %s183
      %p185 = scmp.eq.s32.totalorder %s35, 0
      %p186 = por %p184, %p185
      %s188 = sadd.s32 %s187, 1
      %p191 = scmp.eq.s32.totalorder %s29, 1
      %p192 = scmp.ne.s32.totalorder %s187, %s189
      %p193 = scmp.eq.s32.totalorder %s29, 0
      %p194 = por %p192, %p193
      %p195 = scmp.ne.s32.totalorder %s187, %s189
      %p196 = scmp.eq.s32.totalorder %s34, 1
      %p197 = por %p195, %p196
      %p198 = scmp.ne.s32.totalorder %s189, %s190
      %p199 = scmp.eq.s32.totalorder %s34, 0
      %p200 = por %p198, %p199
      %p201 = scmp.ne.s32.totalorder %s189, %s190
      %p202 = scmp.eq.s32.totalorder %s35, 1
      %p203 = por %p201, %p202
      %p205 = scmp.ne.s32.totalorder %s190, %s204
      %p206 = scmp.eq.s32.totalorder %s35, 0
      %p207 = por %p205, %p206
      %s209 = sadd.s32 %s208, 1
      %p212 = scmp.eq.s32.totalorder %s29, 1
      %p213 = scmp.ne.s32.totalorder %s208, %s210
      %p214 = scmp.eq.s32.totalorder %s29, 0
      %p215 = por %p213, %p214
      %p216 = scmp.ne.s32.totalorder %s208, %s210
      %p217 = scmp.eq.s32.totalorder %s34, 1
      %p218 = por %p216, %p217
      %p219 = scmp.ne.s32.totalorder %s210, %s211
      %p220 = scmp.eq.s32.totalorder %s34, 0
      %p221 = por %p219, %p220
      %p222 = scmp.ne.s32.totalorder %s210, %s211
      %p223 = scmp.eq.s32.totalorder %s35, 1
      %p224 = por %p222, %p223
      %p226 = scmp.ne.s32.totalorder %s211, %s225
      %p227 = scmp.eq.s32.totalorder %s35, 0
      %p228 = por %p226, %p227
      %s229 = ssub.s32 %s36, %s48
      %s230 = ssub.s32 %s37, %s44
      %s231 = sor.u32 %s229, %s230
      %p232 = scmp.eq.s32.totalorder %s231, 0
      %s234 = sadd.s32 %s233, 1
      %s235 = scalar_select %p232, %s233, %s234
      %p238 = pneg %p232
      %p239 = scmp.eq.s32.totalorder %s29, 1
      %p240 = por %p238, %p239
      %p241 = scmp.ne.s32.totalorder %s233, %s236
      %p242 = scmp.eq.s32.totalorder %s29, 0
      %p243 = por %p241, %p242
      %p244 = scmp.ne.s32.totalorder %s233, %s236
      %p245 = scmp.eq.s32.totalorder %s34, 1
      %p246 = por %p244, %p245
      %p247 = scmp.ne.s32.totalorder %s236, %s237
      %p248 = scmp.eq.s32.totalorder %s34, 0
      %p249 = por %p247, %p248
      %p250 = scmp.ne.s32.totalorder %s236, %s237
      %p251 = scmp.eq.s32.totalorder %s35, 1
      %p252 = por %p250, %p251
      %p254 = scmp.ne.s32.totalorder %s237, %s253
      %p255 = scmp.eq.s32.totalorder %s35, 0
      %p256 = por %p254, %p255
      %s257 = ssub.s32 %s36, %s48
      %s258 = ssub.s32 %s37, %s44
      %s259 = sor.u32 %s257, %s258
      %p260 = scmp.eq.s32.totalorder %s259, 0
      %s262 = sadd.s32 %s261, 1
      %s263 = scalar_select %p260, %s261, %s262
      %p266 = pneg %p260
      %p267 = scmp.eq.s32.totalorder %s29, 1
      %p268 = por %p266, %p267
      %p269 = scmp.ne.s32.totalorder %s261, %s264
      %p270 = scmp.eq.s32.totalorder %s29, 0
      %p271 = por %p269, %p270
      %p272 = scmp.ne.s32.totalorder %s261, %s264
      %p273 = scmp.eq.s32.totalorder %s34, 1
      %p274 = por %p272, %p273
      %p275 = scmp.ne.s32.totalorder %s264, %s265
      %p276 = scmp.eq.s32.totalorder %s34, 0
      %p277 = por %p275, %p276
      %p278 = scmp.ne.s32.totalorder %s264, %s265
      %p279 = scmp.eq.s32.totalorder %s35, 1
      %p280 = por %p278, %p279
      %p282 = scmp.ne.s32.totalorder %s265, %s281
      %p283 = scmp.eq.s32.totalorder %s35, 0
      %p284 = por %p282, %p283
      %p285 = scmp.le.s32.totalorder 1, %s29
      %p286 = scmp.lt.s32.totalorder %s29, 3
      %p287 = pnand %p285, %p286
      %p288 = pneg %p287
      // Predicated region
      $region9: #{tpu_custom_call.1} parent=5 // pred_check
        _
      $region10: #{tpu_custom_call.1} parent=5 // pred_check_branch
        %290 = sbr.rel (%p287) target = $region12
      $region11: #{tpu_custom_call.1} parent=5 // pred_region
        %s291 = ssub.s32 %s29, 1
        // Predicated region
        $region13: #{tpu_custom_call.1} parent=11 // pred_check
          %p292 = pneg %p116
        $region14: #{tpu_custom_call.1} parent=11 // pred_check_branch
          %294 = sbr.rel (%p292) target = $region16
        $region15: #{tpu_custom_call.1} parent=11 // pred_region
          %s296 = ssub.s32 512, 512
          %297 = vsyncadd [#allocation10], %s296
          %s298 = sshll.u32 [#allocation11], 4
          %s299 = int_to_ptr.vmem [resolvable:$true] %s298
          %304 = dma.hbm_to_vmem [thread:$0]  %s2, 512, %s299, [#allocation10], 128, 128, 8
        $region16: #{tpu_custom_call.1} parent=11 // pred_fallthru
          _
        // Predicated region
        $region17: #{tpu_custom_call.1} parent=11 // pred_check
          %p305 = pneg %p137
        $region18: #{tpu_custom_call.1} parent=11 // pred_check_branch
          %307 = sbr.rel (%p305) target = $region20
        $region19: #{tpu_custom_call.1} parent=11 // pred_region
          _
        $region20: #{tpu_custom_call.1} parent=11 // pred_fallthru
          _
        // Predicated region
        $region21: #{tpu_custom_call.1} parent=11 // pred_check
          %p308 = pneg %p158
        $region22: #{tpu_custom_call.1} parent=11 // pred_check_branch
          %310 = sbr.rel (%p308) target = $region24
        $region23: #{tpu_custom_call.1} parent=11 // pred_region
          %s312 = ssub.s32 512, 512
          %313 = vsyncadd [#allocation13], %s312
          %s314 = sshll.u32 [#allocation12], 4
          %s315 = int_to_ptr.vmem [resolvable:$true] %s314
          %320 = dma.hbm_to_vmem [thread:$0]  %s4, 512, %s315, [#allocation13], 128, 128, 8
        $region24: #{tpu_custom_call.1} parent=11 // pred_fallthru
          _
        // Predicated region
        $region25: #{tpu_custom_call.1} parent=11 // pred_check
          %p321 = pneg %p179
        $region26: #{tpu_custom_call.1} parent=11 // pred_check_branch
          %323 = sbr.rel (%p321) target = $region28
        $region27: #{tpu_custom_call.1} parent=11 // pred_region
          _
        $region28: #{tpu_custom_call.1} parent=11 // pred_fallthru
          _
        // Predicated region
        $region29: #{tpu_custom_call.1} parent=11 // pred_check
          %p324 = pneg %p200
        $region30: #{tpu_custom_call.1} parent=11 // pred_check_branch
          %326 = sbr.rel (%p324) target = $region32
        $region31: #{tpu_custom_call.1} parent=11 // pred_region
          %s328 = ssub.s32 512, 512
          %329 = vsyncadd [#allocation13], %s328
          %s330 = sshll.u32 [#allocation14], 4
          %s331 = int_to_ptr.vmem [resolvable:$true] %s330
          %336 = dma.hbm_to_vmem [thread:$0]  %s6, 512, %s331, [#allocation13], 128, 128, 8
        $region32: #{tpu_custom_call.1} parent=11 // pred_fallthru
          _
        // Predicated region
        $region33: #{tpu_custom_call.1} parent=11 // pred_check
          %p337 = pneg %p221
        $region34: #{tpu_custom_call.1} parent=11 // pred_check_branch
          %339 = sbr.rel (%p337) target = $region36
        $region35: #{tpu_custom_call.1} parent=11 // pred_region
          _
        $region36: #{tpu_custom_call.1} parent=11 // pred_fallthru
          _
      $region12: #{tpu_custom_call.1} parent=5 // pred_fallthru
        _
      %p340 = scmp.lt.s32.totalorder %s29, 2
      // Predicated region
      $region37: #{tpu_custom_call.1} parent=5 // pred_check
        %p341 = pneg %p340
      $region38: #{tpu_custom_call.1} parent=5 // pred_check_branch
        %343 = sbr.rel (%p341) target = $region40
      $region39: #{tpu_custom_call.1} parent=5 // pred_region
        // Predicated region
        $region41: #{tpu_custom_call.1} parent=39 // pred_check
          %p344 = pneg %p63
        $region42: #{tpu_custom_call.1} parent=39 // pred_check_branch
          %346 = sbr.rel (%p344) target = $region44
        $region43: #{tpu_custom_call.1} parent=39 // pred_region
          %s347 = sand.u32 %s53, 1
          %s348 = scalar_lea.sflag [#allocation7], %s347
          %s349 = sand.u32 %s53, 1
          %s350 = smul.addr %s349, 8
          %s351 = scalar_lea.vmem [#allocation6], %s350
          %s353 = ssub.s32 128, 128
          %354 = vsyncadd %s348, %s353
          %s355 = sadd.s32 %s37, %s36
          %s356 = smul.addr %s355, 128
          %s357 = scalar_lea.hbm %s0, %s356
          %s359 = sshll.u32 %s351, 4
          %s360 = int_to_ptr.vmem [resolvable:$true] %s359
          %362 = dma.hbm_to_vmem [thread:$0]  %s357, 128, %s360, %s348
        $region44: #{tpu_custom_call.1} parent=39 // pred_fallthru
          _
        // Predicated region
        $region45: #{tpu_custom_call.1} parent=39 // pred_check
          %p363 = pneg %p89
        $region46: #{tpu_custom_call.1} parent=39 // pred_check_branch
          %365 = sbr.rel (%p363) target = $region48
        $region47: #{tpu_custom_call.1} parent=39 // pred_region
          %s366 = sand.u32 %s29, 1
          %s367 = scalar_lea.sflag [#allocation10], %s366
          %s368 = sand.u32 %s79, 1
          %s369 = smul.addr %s368, 8
          %s370 = scalar_lea.vmem [#allocation9], %s369
          %s372 = ssub.s32 128, 128
          %373 = vsyncadd %s367, %s372
          %s374 = smul.addr %s36, 128
          %s375 = scalar_lea.hbm %s1, %s374
          %s377 = sshll.u32 %s370, 4
          %s378 = int_to_ptr.vmem [resolvable:$true] %s377
          %380 = dma.hbm_to_vmem [thread:$0]  %s375, 128, %s378, %s367
        $region48: #{tpu_custom_call.1} parent=39 // pred_fallthru
          _
      $region40: #{tpu_custom_call.1} parent=5 // pred_fallthru
        _
      %p381 = scmp.le.s32.totalorder 1, %s29
      %p382 = scmp.lt.s32.totalorder %s29, 3
      %p383 = pnand %p381, %p382
      %p384 = pneg %p383
      // Predicated region
      $region49: #{tpu_custom_call.1} parent=5 // pred_check
        _
      $region50: #{tpu_custom_call.1} parent=5 // pred_check_branch
        %386 = sbr.rel (%p383) target = $region52
      $region51: #{tpu_custom_call.1} parent=5 // pred_region
        %s387 = ssub.s32 %s29, 1
        %s388 = sand.u32 %s56, 1
        %s389 = scalar_lea.sflag [#allocation7], %s388
        %s390 = sand.u32 %s56, 1
        %s391 = smul.addr %s390, 8
        %s392 = scalar_lea.vmem [#allocation6], %s391
        // Predicated region
        $region53: #{tpu_custom_call.1} parent=51 // pred_check
          %p393 = pneg %p69
        $region54: #{tpu_custom_call.1} parent=51 // pred_check_branch
          %395 = sbr.rel (%p393) target = $region56
        $region55: #{tpu_custom_call.1} parent=51 // pred_region
          %396 = dma.done %s389, 128
        $region56: #{tpu_custom_call.1} parent=51 // pred_fallthru
          _
        %s397 = sand.u32 %s34, 1
        %s398 = scalar_lea.sflag [#allocation10], %s397
        %s399 = sand.u32 %s82, 1
        %s400 = smul.addr %s399, 8
        %s401 = scalar_lea.vmem [#allocation9], %s400
        // Predicated region
        $region57: #{tpu_custom_call.1} parent=51 // pred_check
          %p402 = pneg %p95
        $region58: #{tpu_custom_call.1} parent=51 // pred_check_branch
          %404 = sbr.rel (%p402) target = $region60
        $region59: #{tpu_custom_call.1} parent=51 // pred_region
          %405 = dma.done %s398, 128
        $region60: #{tpu_custom_call.1} parent=51 // pred_fallthru
          _
        // Predicated region
        $region61: #{tpu_custom_call.1} parent=51 // pred_check
          %p406 = pneg %p116
        $region62: #{tpu_custom_call.1} parent=51 // pred_check_branch
          %408 = sbr.rel (%p406) target = $region64
        $region63: #{tpu_custom_call.1} parent=51 // pred_region
          %409 = dma.done [#allocation10], 512
        $region64: #{tpu_custom_call.1} parent=51 // pred_fallthru
          _
        // Predicated region
        $region65: #{tpu_custom_call.1} parent=51 // pred_check
          %p410 = pneg %p158
        $region66: #{tpu_custom_call.1} parent=51 // pred_check_branch
          %412 = sbr.rel (%p410) target = $region68
        $region67: #{tpu_custom_call.1} parent=51 // pred_region
          %413 = dma.done [#allocation13], 512
        $region68: #{tpu_custom_call.1} parent=51 // pred_fallthru
          _
        // Predicated region
        $region69: #{tpu_custom_call.1} parent=51 // pred_check
          %p414 = pneg %p200
        $region70: #{tpu_custom_call.1} parent=51 // pred_check_branch
          %416 = sbr.rel (%p414) target = $region72
        $region71: #{tpu_custom_call.1} parent=51 // pred_region
          %417 = dma.done [#allocation13], 512
        $region72: #{tpu_custom_call.1} parent=51 // pred_fallthru
          _
        %s418 = sand.u32 %s56, 1
        %s419 = scalar_lea.sflag [#allocation7], %s418
        %s420 = sand.u32 %s56, 1
        %s421 = smul.addr %s420, 8
        %s422 = scalar_lea.vmem [#allocation6], %s421
        %p423 = pneg %p69
        %p424 = pneg %p66
        %s425 = sand.u32 %s34, 1
        %s426 = scalar_lea.sflag [#allocation10], %s425
        %s427 = sand.u32 %s82, 1
        %s428 = smul.addr %s427, 8
        %s429 = scalar_lea.vmem [#allocation9], %s428
        %p430 = pneg %p95
        %p431 = pneg %p92
        %p432 = pneg %p116
        %p433 = pneg %p113
        %p434 = pneg %p137
        %p435 = pneg %p134
        %p436 = pneg %p158
        %p437 = pneg %p155
        %p438 = pneg %p179
        %p439 = pneg %p176
        %p440 = pneg %p200
        %p441 = pneg %p197
        %p442 = pneg %p221
        %p443 = pneg %p218
        %p444 = pneg %p249
        %p445 = pneg %p246
        %s446 = sand.u32 %s236, 1
        %s447 = scalar_lea.sflag [#allocation8], %s446
        %s448 = sand.u32 %s236, 1
        %s449 = smul.addr %s448, 16
        %s450 = scalar_lea.vmem [#allocation15], %s449
        %p451 = pneg %p277
        %p452 = pneg %p274
        %s453 = sand.u32 %s264, 1
        %s454 = scalar_lea.sflag [#allocation17], %s453
        %s455 = sand.u32 %s264, 1
        %s456 = smul.addr %s455, 8
        %s457 = scalar_lea.vmem [#allocation16], %s456
        %p458 = scmp.eq.s32.totalorder %s39, 0
        // Predicated region
        $region73: #{tpu_custom_call.1} parent=51 // pred_check
          %p459 = pneg %p458
        $region74: #{tpu_custom_call.1} parent=51 // pred_check_branch
          %461 = sbr.rel (%p459) target = $region76
        $region75: #{tpu_custom_call.1} parent=51 // pred_region
          %v462 = vld [vmem:[%s401] sm:$0xff]
          %v463 = vld [vmem:[#allocation12] sm:$0xff]
          %v464 = vld [vmem:[#allocation12 + $0x8] sm:$0xff]
          %v465 = vld [vmem:[#allocation12 + $0x10] sm:$0xff]
          %v466 = vld [vmem:[#allocation12 + $0x18] sm:$0xff]
          %v467 = vld [vmem:[%s5] sm:$0x1]
          %v469 = vlaneseq
          %v470 = vshrl.u32 %v469, 7
          %v471 = vsub.s32 0, %v470
          %v472 = vrot.slane %v467, %v471
          %vm474 = vcmask 261120
          %v476 = vsel %vm474, %v462, 0
          %478 = vmatprep.subr.mxu0 0.0
          %479 = vmatpush1.msra.mxu0 0.0
          %480 = vmatprep.subr.mxu0 0.0
          %481 = vmatpush1.msra.mxu0 0.0
          %482 = vmatprep.subr.mxu0 0.0
          %483 = vmatpush1.msra.mxu0 0.0
          %484 = vmatprep.subr.mxu0 0.0
          %485 = vmatpush1.msra.mxu0 0.0
          %486 = vmatprep.subr.mxu0 0.0
          %487 = vmatpush1.msra.mxu0 0.0
          %488 = vmatprep.subr.mxu0 0.0
          %489 = vmatpush1.msra.mxu0 0.0
          %490 = vmatprep.subr.mxu0 0.0
          %491 = vmatpush1.msra.mxu0 0.0
          %492 = vmatprep.subr.mxu0 0.0
          %493 = vmatpush1.msra.mxu0 0.0
          %494 = vmatprep.subr.mxu0 0.0
          %495 = vmatpush1.msra.mxu0 0.0
          %496 = vmatprep.subr.mxu0 0.0
          %497 = vmatpush1.msra.mxu0 0.0
          %498 = vmatprep.subr.mxu0 0.0
          %499 = vmatpush1.msra.mxu0 0.0
          %500 = vmatprep.subr.mxu0 0.0
          %501 = vmatpush1.msra.mxu0 0.0
          %502 = vmatprep.subr.mxu0 0.0
          %503 = vmatpush1.msra.mxu0 %v466
          %504 = vmatprep.subr.mxu0 0.0
          %505 = vmatpush1.msra.mxu0 %v465
          %506 = vmatprep.subr.mxu0 0.0
          %507 = vmatpush1.msra.mxu0 %v464
          %508 = vmatprep.subr.mxu0 0.0
          %509 = vmatpush1.msra.mxu0 %v463
          %510 = vmatprep.subr.mxu0 0.0
          %511 = vmatpush2.msra.mxu0 0.0
          %512 = vmatprep.subr.mxu0 0.0
          %513 = vmatpush2.msra.mxu0 0.0
          %514 = vmatprep.subr.mxu0 0.0
          %515 = vmatpush2.msra.mxu0 0.0
          %516 = vmatprep.subr.mxu0 0.0
          %517 = vmatpush2.msra.mxu0 0.0
          %518 = vmatprep.subr.mxu0 0.0
          %519 = vmatpush2.msra.mxu0 0.0
          %520 = vmatprep.subr.mxu0 0.0
          %521 = vmatpush2.msra.mxu0 0.0
          %522 = vmatprep.subr.mxu0 0.0
          %523 = vmatpush2.msra.mxu0 0.0
          %524 = vmatprep.subr.mxu0 0.0
          %525 = vmatpush2.msra.mxu0 0.0
          %526 = vmatprep.subr.mxu0 0.0
          %527 = vmatpush2.msra.mxu0 0.0
          %528 = vmatprep.subr.mxu0 0.0
          %529 = vmatpush2.msra.mxu0 0.0
          %530 = vmatprep.subr.mxu0 0.0
          %531 = vmatpush2.msra.mxu0 0.0
          %532 = vmatprep.subr.mxu0 0.0
          %533 = vmatpush2.msra.mxu0 0.0
          %534 = vmatprep.subr.mxu0 0.0
          %535 = vmatpush2.msra.mxu0 0.0
          %536 = vmatprep.subr.mxu0 0.0
          %537 = vmatpush2.msra.mxu0 0.0
          %538 = vmatprep.subr.mxu0 0.0
          %539 = vmatpush2.msra.mxu0 0.0
          %540 = vmatprep.subr.mxu0 0.0
          %541 = vmatpush2.msra.mxu0 0.0
          %542 = vmatprep.mubr.f32.mxu0 0.0
          %543 = vmatmul.mubr.f32.gmra.mxu0 %v476
          %v544 = vpop.f32.mrf.mxu0
          %v545 = vadd.f32 %v472, %v544
          %v546 = vpop.f32.mrf.mxu0
          %547 = vdwg.mxu0
          %vm548 = vcmask 130048
          %549 = vst.msk [vmem:[#allocation3] sm:$0xff] %vm548, %v545
          %551 = vrot.lane.b32.xlu0 %v545, 96
          %v552 = vpop.permute.xlu0 %551
          %554 = vst.msk [vmem:[#allocation4] sm:$0xff] %vm548, %v552
          %555 = vrot.lane.b32.xlu0 %v545, 112
          %v556 = vpop.permute.xlu0 %555
          %s558 = scalar_lea.vmem [#allocation3], 8
          %559 = vst.msk [vmem:[%s558] sm:$0xff] %vm548, %v556
          %560 = vrot.lane.b32.xlu0 %v545, 80
          %v561 = vpop.permute.xlu0 %560
          %s563 = scalar_lea.vmem [#allocation4], 8
          %564 = vst.msk [vmem:[%s563] sm:$0xff] %vm548, %v561
        $region76: #{tpu_custom_call.1} parent=51 // pred_fallthru
          _
        %v565 = vld [vmem:[%s392] sm:$0xff]
        %v566 = vld [vmem:[#allocation11] sm:$0xff]
        %v567 = vld [vmem:[#allocation11 + $0x8] sm:$0xff]
        %v568 = vld [vmem:[#allocation11 + $0x10] sm:$0xff]
        %v569 = vld [vmem:[#allocation11 + $0x18] sm:$0xff]
        %v570 = vld [vmem:[%s3] sm:$0x1]
        %v572 = vlaneseq
        %v573 = vshrl.u32 %v572, 7
        %v574 = vsub.s32 0, %v573
        %v575 = vrot.slane %v570, %v574
        %vm577 = vcmask 261120
        %v579 = vsel %vm577, %v565, 0
        %581 = vmatprep.subr.mxu0 0.0
        %582 = vmatpush1.msra.mxu0 0.0
        %583 = vmatprep.subr.mxu0 0.0
        %584 = vmatpush1.msra.mxu0 0.0
        %585 = vmatprep.subr.mxu0 0.0
        %586 = vmatpush1.msra.mxu0 0.0
        %587 = vmatprep.subr.mxu0 0.0
        %588 = vmatpush1.msra.mxu0 0.0
        %589 = vmatprep.subr.mxu0 0.0
        %590 = vmatpush1.msra.mxu0 0.0
        %591 = vmatprep.subr.mxu0 0.0
        %592 = vmatpush1.msra.mxu0 0.0
        %593 = vmatprep.subr.mxu0 0.0
        %594 = vmatpush1.msra.mxu0 0.0
        %595 = vmatprep.subr.mxu0 0.0
        %596 = vmatpush1.msra.mxu0 0.0
        %597 = vmatprep.subr.mxu0 0.0
        %598 = vmatpush1.msra.mxu0 0.0
        %599 = vmatprep.subr.mxu0 0.0
        %600 = vmatpush1.msra.mxu0 0.0
        %601 = vmatprep.subr.mxu0 0.0
        %602 = vmatpush1.msra.mxu0 0.0
        %603 = vmatprep.subr.mxu0 0.0
        %604 = vmatpush1.msra.mxu0 0.0
        %605 = vmatprep.subr.mxu0 0.0
        %606 = vmatpush1.msra.mxu0 %v569
        %607 = vmatprep.subr.mxu0 0.0
        %608 = vmatpush1.msra.mxu0 %v568
        %609 = vmatprep.subr.mxu0 0.0
        %610 = vmatpush1.msra.mxu0 %v567
        %611 = vmatprep.subr.mxu0 0.0
        %612 = vmatpush1.msra.mxu0 %v566
        %613 = vmatprep.subr.mxu0 0.0
        %614 = vmatpush2.msra.mxu0 0.0
        %615 = vmatprep.subr.mxu0 0.0
        %616 = vmatpush2.msra.mxu0 0.0
        %617 = vmatprep.subr.mxu0 0.0
        %618 = vmatpush2.msra.mxu0 0.0
        %619 = vmatprep.subr.mxu0 0.0
        %620 = vmatpush2.msra.mxu0 0.0
        %621 = vmatprep.subr.mxu0 0.0
        %622 = vmatpush2.msra.mxu0 0.0
        %623 = vmatprep.subr.mxu0 0.0
        %624 = vmatpush2.msra.mxu0 0.0
        %625 = vmatprep.subr.mxu0 0.0
        %626 = vmatpush2.msra.mxu0 0.0
        %627 = vmatprep.subr.mxu0 0.0
        %628 = vmatpush2.msra.mxu0 0.0
        %629 = vmatprep.subr.mxu0 0.0
        %630 = vmatpush2.msra.mxu0 0.0
        %631 = vmatprep.subr.mxu0 0.0
        %632 = vmatpush2.msra.mxu0 0.0
        %633 = vmatprep.subr.mxu0 0.0
        %634 = vmatpush2.msra.mxu0 0.0
        %635 = vmatprep.subr.mxu0 0.0
        %636 = vmatpush2.msra.mxu0 0.0
        %637 = vmatprep.subr.mxu0 0.0
        %638 = vmatpush2.msra.mxu0 0.0
        %639 = vmatprep.subr.mxu0 0.0
        %640 = vmatpush2.msra.mxu0 0.0
        %641 = vmatprep.subr.mxu0 0.0
        %642 = vmatpush2.msra.mxu0 0.0
        %643 = vmatprep.subr.mxu0 0.0
        %644 = vmatpush2.msra.mxu0 0.0
        %645 = vmatprep.mubr.f32.mxu0 0.0
        %646 = vmatmul.mubr.f32.gmra.mxu0 %v579
        %v647 = vpop.f32.mrf.mxu0
        %v648 = vadd.f32 %v575, %v647
        %v649 = vpop.f32.mrf.mxu0
        %650 = vdwg.mxu0
        %vm651 = vcmask 130048
        %652 = vst.msk [vmem:[#allocation2] sm:$0xff] %vm651, %v648
        %654 = vrot.lane.b32.xlu0 %v648, 112
        %v655 = vpop.permute.xlu0 %654
        %s657 = scalar_lea.vmem [#allocation2], 8
        %658 = vst.msk [vmem:[%s657] sm:$0xff] %vm651, %v655
        %v659 = vld [vmem:[#allocation2] sm:$0xff]
        %v660 = vld [vmem:[#allocation2 + $0x8] sm:$0xff]
        %v661 = vld [vmem:[#allocation3] sm:$0xff]
        %v662 = vld [vmem:[#allocation3 + $0x8] sm:$0xff]
        %v663 = vld [vmem:[#allocation4] sm:$0xff]
        %v664 = vld [vmem:[#allocation4 + $0x8] sm:$0xff]
        %v666 = vsel %vm651, %v659, 0
        %v669 = vsel %vm651, %v661, 0
        %671 = vmatprep.subr.mxu0 0.0
        %672 = vmatpush1.xpose.msra.mxu0 0.0
        %673 = vmatprep.subr.mxu0 0.0
        %674 = vmatpush1.xpose.msra.mxu0 0.0
        %675 = vmatprep.subr.mxu0 0.0
        %676 = vmatpush1.xpose.msra.mxu0 0.0
        %677 = vmatprep.subr.mxu0 0.0
        %678 = vmatpush1.xpose.msra.mxu0 0.0
        %679 = vmatprep.subr.mxu0 0.0
        %680 = vmatpush1.xpose.msra.mxu0 0.0
        %681 = vmatprep.subr.mxu0 0.0
        %682 = vmatpush1.xpose.msra.mxu0 0.0
        %683 = vmatprep.subr.mxu0 0.0
        %684 = vmatpush1.xpose.msra.mxu0 0.0
        %685 = vmatprep.subr.mxu0 0.0
        %686 = vmatpush1.xpose.msra.mxu0 0.0
        %687 = vmatprep.subr.mxu0 0.0
        %688 = vmatpush1.xpose.msra.mxu0 0.0
        %689 = vmatprep.subr.mxu0 0.0
        %690 = vmatpush1.xpose.msra.mxu0 0.0
        %691 = vmatprep.subr.mxu0 0.0
        %692 = vmatpush1.xpose.msra.mxu0 0.0
        %693 = vmatprep.subr.mxu0 0.0
        %694 = vmatpush1.xpose.msra.mxu0 0.0
        %695 = vmatprep.subr.mxu0 0.0
        %696 = vmatpush1.xpose.msra.mxu0 0.0
        %697 = vmatprep.subr.mxu0 0.0
        %698 = vmatpush1.xpose.msra.mxu0 0.0
        %699 = vmatprep.subr.mxu0 0.0
        %700 = vmatpush1.xpose.msra.mxu0 0.0
        %701 = vmatprep.subr.mxu0 0.0
        %702 = vmatpush1.xpose.msra.mxu0 %v669
        %703 = vmatprep.subr.mxu0 0.0
        %704 = vmatpush2.xpose.msra.mxu0 0.0
        %705 = vmatprep.subr.mxu0 0.0
        %706 = vmatpush2.xpose.msra.mxu0 0.0
        %707 = vmatprep.subr.mxu0 0.0
        %708 = vmatpush2.xpose.msra.mxu0 0.0
        %709 = vmatprep.subr.mxu0 0.0
        %710 = vmatpush2.xpose.msra.mxu0 0.0
        %711 = vmatprep.subr.mxu0 0.0
        %712 = vmatpush2.xpose.msra.mxu0 0.0
        %713 = vmatprep.subr.mxu0 0.0
        %714 = vmatpush2.xpose.msra.mxu0 0.0
        %715 = vmatprep.subr.mxu0 0.0
        %716 = vmatpush2.xpose.msra.mxu0 0.0
        %717 = vmatprep.subr.mxu0 0.0
        %718 = vmatpush2.xpose.msra.mxu0 0.0
        %719 = vmatprep.subr.mxu0 0.0
        %720 = vmatpush2.xpose.msra.mxu0 0.0
        %721 = vmatprep.subr.mxu0 0.0
        %722 = vmatpush2.xpose.msra.mxu0 0.0
        %723 = vmatprep.subr.mxu0 0.0
        %724 = vmatpush2.xpose.msra.mxu0 0.0
        %725 = vmatprep.subr.mxu0 0.0
        %726 = vmatpush2.xpose.msra.mxu0 0.0
        %727 = vmatprep.subr.mxu0 0.0
        %728 = vmatpush2.xpose.msra.mxu0 0.0
        %729 = vmatprep.subr.mxu0 0.0
        %730 = vmatpush2.xpose.msra.mxu0 0.0
        %731 = vmatprep.subr.mxu0 0.0
        %732 = vmatpush2.xpose.msra.mxu0 0.0
        %733 = vmatprep.subr.mxu0 0.0
        %734 = vmatpush2.xpose.msra.mxu0 0.0
        %735 = vmatprep.mubr.f32.mxu0 0.0
        %736 = vmatmul.mubr.f32.gmra.mxu0 %v666
        %v737 = vpop.f32.mrf.mxu0
        %v738 = vadd.f32 0.0, %v737
        %v739 = vpop.f32.mrf.mxu0
        %740 = vdwg.mxu0
        %v742 = vsel %vm651, %v660, 0
        %v745 = vsel %vm651, %v662, 0
        %747 = vmatprep.subr.mxu0 0.0
        %748 = vmatpush1.xpose.msra.mxu0 0.0
        %749 = vmatprep.subr.mxu0 0.0
        %750 = vmatpush1.xpose.msra.mxu0 0.0
        %751 = vmatprep.subr.mxu0 0.0
        %752 = vmatpush1.xpose.msra.mxu0 0.0
        %753 = vmatprep.subr.mxu0 0.0
        %754 = vmatpush1.xpose.msra.mxu0 0.0
        %755 = vmatprep.subr.mxu0 0.0
        %756 = vmatpush1.xpose.msra.mxu0 0.0
        %757 = vmatprep.subr.mxu0 0.0
        %758 = vmatpush1.xpose.msra.mxu0 0.0
        %759 = vmatprep.subr.mxu0 0.0
        %760 = vmatpush1.xpose.msra.mxu0 0.0
        %761 = vmatprep.subr.mxu0 0.0
        %762 = vmatpush1.xpose.msra.mxu0 0.0
        %763 = vmatprep.subr.mxu0 0.0
        %764 = vmatpush1.xpose.msra.mxu0 0.0
        %765 = vmatprep.subr.mxu0 0.0
        %766 = vmatpush1.xpose.msra.mxu0 0.0
        %767 = vmatprep.subr.mxu0 0.0
        %768 = vmatpush1.xpose.msra.mxu0 0.0
        %769 = vmatprep.subr.mxu0 0.0
        %770 = vmatpush1.xpose.msra.mxu0 0.0
        %771 = vmatprep.subr.mxu0 0.0
        %772 = vmatpush1.xpose.msra.mxu0 0.0
        %773 = vmatprep.subr.mxu0 0.0
        %774 = vmatpush1.xpose.msra.mxu0 0.0
        %775 = vmatprep.subr.mxu0 0.0
        %776 = vmatpush1.xpose.msra.mxu0 0.0
        %777 = vmatprep.subr.mxu0 0.0
        %778 = vmatpush1.xpose.msra.mxu0 %v745
        %779 = vmatprep.subr.mxu0 0.0
        %780 = vmatpush2.xpose.msra.mxu0 0.0
        %781 = vmatprep.subr.mxu0 0.0
        %782 = vmatpush2.xpose.msra.mxu0 0.0
        %783 = vmatprep.subr.mxu0 0.0
        %784 = vmatpush2.xpose.msra.mxu0 0.0
        %785 = vmatprep.subr.mxu0 0.0
        %786 = vmatpush2.xpose.msra.mxu0 0.0
        %787 = vmatprep.subr.mxu0 0.0
        %788 = vmatpush2.xpose.msra.mxu0 0.0
        %789 = vmatprep.subr.mxu0 0.0
        %790 = vmatpush2.xpose.msra.mxu0 0.0
        %791 = vmatprep.subr.mxu0 0.0
        %792 = vmatpush2.xpose.msra.mxu0 0.0
        %793 = vmatprep.subr.mxu0 0.0
        %794 = vmatpush2.xpose.msra.mxu0 0.0
        %795 = vmatprep.subr.mxu0 0.0
        %796 = vmatpush2.xpose.msra.mxu0 0.0
        %797 = vmatprep.subr.mxu0 0.0
        %798 = vmatpush2.xpose.msra.mxu0 0.0
        %799 = vmatprep.subr.mxu0 0.0
        %800 = vmatpush2.xpose.msra.mxu0 0.0
        %801 = vmatprep.subr.mxu0 0.0
        %802 = vmatpush2.xpose.msra.mxu0 0.0
        %803 = vmatprep.subr.mxu0 0.0
        %804 = vmatpush2.xpose.msra.mxu0 0.0
        %805 = vmatprep.subr.mxu0 0.0
        %806 = vmatpush2.xpose.msra.mxu0 0.0
        %807 = vmatprep.subr.mxu0 0.0
        %808 = vmatpush2.xpose.msra.mxu0 0.0
        %809 = vmatprep.subr.mxu0 0.0
        %810 = vmatpush2.xpose.msra.mxu0 0.0
        %811 = vmatprep.mubr.f32.mxu0 0.0
        %812 = vmatmul.mubr.f32.gmra.mxu0 %v742
        %v813 = vpop.f32.mrf.mxu0
        %v814 = vadd.f32 0.0, %v813
        %v815 = vpop.f32.mrf.mxu0
        %816 = vdwg.mxu0
        %v817 = vmul.f32 %v738, 0.25
        %v818 = vmul.f32 %v814, 0.25
        %vm819 = vcmask 64512
        %v820 = vsel %vm819, %v817, -inf
        %821 = vmax.xlane.f32.xlu0 %v820
        %v822 = vpop.xlane.xlu0 %821
        %v823 = vsel %vm819, %v818, -inf
        %824 = vmax.xlane.f32.xlu0 %v823
        %v825 = vpop.xlane.xlu0 %824
        %v826 = vsub.f32 %v817, %v822
        %v827 = vsub.f32 %v818, %v825
        %v828 = vmul.f32 %v826, 1.442695
        %v829 = vpow.pop %v828
        %v830 = vmul.f32 %v827, 1.442695
        %v831 = vpow.pop %v830
        %v832 = vsel %vm819, %v829, 0.0
        %833 = vadd.xlane.f32.xlu0 %v832
        %v834 = vpop.xlane.xlu0 %833
        %v835 = vsel %vm819, %v831, 0.0
        %836 = vadd.xlane.f32.xlu0 %v835
        %v837 = vpop.xlane.xlu0 %836
        %v838 = vrcp.pop %v834
        %v839 = vrcp.pop %v837
        %v840 = vmul.f32 %v829, %v838
        %v841 = vmul.f32 %v831, %v839
        %842 = vst.msk [vmem:[%s450] sm:$0xff] %vm819, %v840
        %843 = vst.msk [vmem:[%s450 + $0x8] sm:$0xff] %vm819, %v841
        %v845 = vsel %vm819, %v840, 0
        %847 = vmatprep.subr.mxu0 0.0
        %848 = vmatpush1.msra.mxu0 0.0
        %849 = vmatprep.subr.mxu0 0.0
        %850 = vmatpush1.msra.mxu0 0.0
        %851 = vmatprep.subr.mxu0 0.0
        %852 = vmatpush1.msra.mxu0 0.0
        %853 = vmatprep.subr.mxu0 0.0
        %854 = vmatpush1.msra.mxu0 0.0
        %855 = vmatprep.subr.mxu0 0.0
        %856 = vmatpush1.msra.mxu0 0.0
        %857 = vmatprep.subr.mxu0 0.0
        %858 = vmatpush1.msra.mxu0 0.0
        %859 = vmatprep.subr.mxu0 0.0
        %860 = vmatpush1.msra.mxu0 0.0
        %861 = vmatprep.subr.mxu0 0.0
        %862 = vmatpush1.msra.mxu0 0.0
        %863 = vmatprep.subr.mxu0 0.0
        %864 = vmatpush1.msra.mxu0 0.0
        %865 = vmatprep.subr.mxu0 0.0
        %866 = vmatpush1.msra.mxu0 0.0
        %867 = vmatprep.subr.mxu0 0.0
        %868 = vmatpush1.msra.mxu0 0.0
        %869 = vmatprep.subr.mxu0 0.0
        %870 = vmatpush1.msra.mxu0 0.0
        %871 = vmatprep.subr.mxu0 0.0
        %872 = vmatpush1.msra.mxu0 0.0
        %873 = vmatprep.subr.mxu0 0.0
        %874 = vmatpush1.msra.mxu0 0.0
        %875 = vmatprep.subr.mxu0 0.0
        %876 = vmatpush1.msra.mxu0 0.0
        %877 = vmatprep.subr.mxu0 0.0
        %878 = vmatpush1.msra.mxu0 %v663
        %879 = vmatprep.subr.mxu0 0.0
        %880 = vmatpush2.msra.mxu0 0.0
        %881 = vmatprep.subr.mxu0 0.0
        %882 = vmatpush2.msra.mxu0 0.0
        %883 = vmatprep.subr.mxu0 0.0
        %884 = vmatpush2.msra.mxu0 0.0
        %885 = vmatprep.subr.mxu0 0.0
        %886 = vmatpush2.msra.mxu0 0.0
        %887 = vmatprep.subr.mxu0 0.0
        %888 = vmatpush2.msra.mxu0 0.0
        %889 = vmatprep.subr.mxu0 0.0
        %890 = vmatpush2.msra.mxu0 0.0
        %891 = vmatprep.subr.mxu0 0.0
        %892 = vmatpush2.msra.mxu0 0.0
        %893 = vmatprep.subr.mxu0 0.0
        %894 = vmatpush2.msra.mxu0 0.0
        %895 = vmatprep.subr.mxu0 0.0
        %896 = vmatpush2.msra.mxu0 0.0
        %897 = vmatprep.subr.mxu0 0.0
        %898 = vmatpush2.msra.mxu0 0.0
        %899 = vmatprep.subr.mxu0 0.0
        %900 = vmatpush2.msra.mxu0 0.0
        %901 = vmatprep.subr.mxu0 0.0
        %902 = vmatpush2.msra.mxu0 0.0
        %903 = vmatprep.subr.mxu0 0.0
        %904 = vmatpush2.msra.mxu0 0.0
        %905 = vmatprep.subr.mxu0 0.0
        %906 = vmatpush2.msra.mxu0 0.0
        %907 = vmatprep.subr.mxu0 0.0
        %908 = vmatpush2.msra.mxu0 0.0
        %909 = vmatprep.subr.mxu0 0.0
        %910 = vmatpush2.msra.mxu0 0.0
        %911 = vmatprep.mubr.f32.mxu0 0.0
        %912 = vmatmul.mubr.f32.gmra.mxu0 %v845
        %v913 = vpop.f32.mrf.mxu0
        %v914 = vadd.f32 0.0, %v913
        %v915 = vpop.f32.mrf.mxu0
        %916 = vdwg.mxu0
        %v918 = vsel %vm819, %v841, 0
        %920 = vmatprep.subr.mxu0 0.0
        %921 = vmatpush1.msra.mxu0 0.0
        %922 = vmatprep.subr.mxu0 0.0
        %923 = vmatpush1.msra.mxu0 0.0
        %924 = vmatprep.subr.mxu0 0.0
        %925 = vmatpush1.msra.mxu0 0.0
        %926 = vmatprep.subr.mxu0 0.0
        %927 = vmatpush1.msra.mxu0 0.0
        %928 = vmatprep.subr.mxu0 0.0
        %929 = vmatpush1.msra.mxu0 0.0
        %930 = vmatprep.subr.mxu0 0.0
        %931 = vmatpush1.msra.mxu0 0.0
        %932 = vmatprep.subr.mxu0 0.0
        %933 = vmatpush1.msra.mxu0 0.0
        %934 = vmatprep.subr.mxu0 0.0
        %935 = vmatpush1.msra.mxu0 0.0
        %936 = vmatprep.subr.mxu0 0.0
        %937 = vmatpush1.msra.mxu0 0.0
        %938 = vmatprep.subr.mxu0 0.0
        %939 = vmatpush1.msra.mxu0 0.0
        %940 = vmatprep.subr.mxu0 0.0
        %941 = vmatpush1.msra.mxu0 0.0
        %942 = vmatprep.subr.mxu0 0.0
        %943 = vmatpush1.msra.mxu0 0.0
        %944 = vmatprep.subr.mxu0 0.0
        %945 = vmatpush1.msra.mxu0 0.0
        %946 = vmatprep.subr.mxu0 0.0
        %947 = vmatpush1.msra.mxu0 0.0
        %948 = vmatprep.subr.mxu0 0.0
        %949 = vmatpush1.msra.mxu0 0.0
        %950 = vmatprep.subr.mxu0 0.0
        %951 = vmatpush1.msra.mxu0 %v664
        %952 = vmatprep.subr.mxu0 0.0
        %953 = vmatpush2.msra.mxu0 0.0
        %954 = vmatprep.subr.mxu0 0.0
        %955 = vmatpush2.msra.mxu0 0.0
        %956 = vmatprep.subr.mxu0 0.0
        %957 = vmatpush2.msra.mxu0 0.0
        %958 = vmatprep.subr.mxu0 0.0
        %959 = vmatpush2.msra.mxu0 0.0
        %960 = vmatprep.subr.mxu0 0.0
        %961 = vmatpush2.msra.mxu0 0.0
        %962 = vmatprep.subr.mxu0 0.0
        %963 = vmatpush2.msra.mxu0 0.0
        %964 = vmatprep.subr.mxu0 0.0
        %965 = vmatpush2.msra.mxu0 0.0
        %966 = vmatprep.subr.mxu0 0.0
        %967 = vmatpush2.msra.mxu0 0.0
        %968 = vmatprep.subr.mxu0 0.0
        %969 = vmatpush2.msra.mxu0 0.0
        %970 = vmatprep.subr.mxu0 0.0
        %971 = vmatpush2.msra.mxu0 0.0
        %972 = vmatprep.subr.mxu0 0.0
        %973 = vmatpush2.msra.mxu0 0.0
        %974 = vmatprep.subr.mxu0 0.0
        %975 = vmatpush2.msra.mxu0 0.0
        %976 = vmatprep.subr.mxu0 0.0
        %977 = vmatpush2.msra.mxu0 0.0
        %978 = vmatprep.subr.mxu0 0.0
        %979 = vmatpush2.msra.mxu0 0.0
        %980 = vmatprep.subr.mxu0 0.0
        %981 = vmatpush2.msra.mxu0 0.0
        %982 = vmatprep.subr.mxu0 0.0
        %983 = vmatpush2.msra.mxu0 0.0
        %984 = vmatprep.mubr.f32.mxu0 0.0
        %985 = vmatmul.mubr.f32.gmra.mxu0 %v918
        %v986 = vpop.f32.mrf.mxu0
        %v987 = vadd.f32 0.0, %v986
        %v988 = vpop.f32.mrf.mxu0
        %989 = vdwg.mxu0
        %990 = vst.msk [vmem:[#allocation5] sm:$0xff] %vm651, %v914
        %992 = vrot.lane.b32.xlu0 %v987, 16
        %v993 = vpop.permute.xlu0 %992
        %vm995 = vcmask 261248
        %996 = vst.msk [vmem:[#allocation5] sm:$0xff] %vm995, %v993
        %v997 = vld [vmem:[#allocation5] sm:$0xff]
        %v998 = vld [vmem:[#allocation14] sm:$0xff]
        %v999 = vld [vmem:[#allocation14 + $0x8] sm:$0xff]
        %v1000 = vld [vmem:[#allocation14 + $0x10] sm:$0xff]
        %v1001 = vld [vmem:[#allocation14 + $0x18] sm:$0xff]
        %v1002 = vld [vmem:[%s7] sm:$0x1]
        %v1004 = vlaneseq
        %v1005 = vshrl.u32 %v1004, 7
        %v1006 = vsub.s32 0, %v1005
        %v1007 = vrot.slane %v1002, %v1006
        %v1010 = vsel %vm577, %v997, 0
        %1012 = vmatprep.subr.mxu0 0.0
        %1013 = vmatpush1.msra.mxu0 0.0
        %1014 = vmatprep.subr.mxu0 0.0
        %1015 = vmatpush1.msra.mxu0 0.0
        %1016 = vmatprep.subr.mxu0 0.0
        %1017 = vmatpush1.msra.mxu0 0.0
        %1018 = vmatprep.subr.mxu0 0.0
        %1019 = vmatpush1.msra.mxu0 0.0
        %1020 = vmatprep.subr.mxu0 0.0
        %1021 = vmatpush1.msra.mxu0 0.0
        %1022 = vmatprep.subr.mxu0 0.0
        %1023 = vmatpush1.msra.mxu0 0.0
        %1024 = vmatprep.subr.mxu0 0.0
        %1025 = vmatpush1.msra.mxu0 0.0
        %1026 = vmatprep.subr.mxu0 0.0
        %1027 = vmatpush1.msra.mxu0 0.0
        %1028 = vmatprep.subr.mxu0 0.0
        %1029 = vmatpush1.msra.mxu0 0.0
        %1030 = vmatprep.subr.mxu0 0.0
        %1031 = vmatpush1.msra.mxu0 0.0
        %1032 = vmatprep.subr.mxu0 0.0
        %1033 = vmatpush1.msra.mxu0 0.0
        %1034 = vmatprep.subr.mxu0 0.0
        %1035 = vmatpush1.msra.mxu0 0.0
        %1036 = vmatprep.subr.mxu0 0.0
        %1037 = vmatpush1.msra.mxu0 %v1001
        %1038 = vmatprep.subr.mxu0 0.0
        %1039 = vmatpush1.msra.mxu0 %v1000
        %1040 = vmatprep.subr.mxu0 0.0
        %1041 = vmatpush1.msra.mxu0 %v999
        %1042 = vmatprep.subr.mxu0 0.0
        %1043 = vmatpush1.msra.mxu0 %v998
        %1044 = vmatprep.subr.mxu0 0.0
        %1045 = vmatpush2.msra.mxu0 0.0
        %1046 = vmatprep.subr.mxu0 0.0
        %1047 = vmatpush2.msra.mxu0 0.0
        %1048 = vmatprep.subr.mxu0 0.0
        %1049 = vmatpush2.msra.mxu0 0.0
        %1050 = vmatprep.subr.mxu0 0.0
        %1051 = vmatpush2.msra.mxu0 0.0
        %1052 = vmatprep.subr.mxu0 0.0
        %1053 = vmatpush2.msra.mxu0 0.0
        %1054 = vmatprep.subr.mxu0 0.0
        %1055 = vmatpush2.msra.mxu0 0.0
        %1056 = vmatprep.subr.mxu0 0.0
        %1057 = vmatpush2.msra.mxu0 0.0
        %1058 = vmatprep.subr.mxu0 0.0
        %1059 = vmatpush2.msra.mxu0 0.0
        %1060 = vmatprep.subr.mxu0 0.0
        %1061 = vmatpush2.msra.mxu0 0.0
        %1062 = vmatprep.subr.mxu0 0.0
        %1063 = vmatpush2.msra.mxu0 0.0
        %1064 = vmatprep.subr.mxu0 0.0
        %1065 = vmatpush2.msra.mxu0 0.0
        %1066 = vmatprep.subr.mxu0 0.0
        %1067 = vmatpush2.msra.mxu0 0.0
        %1068 = vmatprep.subr.mxu0 0.0
        %1069 = vmatpush2.msra.mxu0 0.0
        %1070 = vmatprep.subr.mxu0 0.0
        %1071 = vmatpush2.msra.mxu0 0.0
        %1072 = vmatprep.subr.mxu0 0.0
        %1073 = vmatpush2.msra.mxu0 0.0
        %1074 = vmatprep.subr.mxu0 0.0
        %1075 = vmatpush2.msra.mxu0 0.0
        %1076 = vmatprep.mubr.f32.mxu0 0.0
        %1077 = vmatmul.mubr.f32.gmra.mxu0 %v1010
        %v1078 = vpop.f32.mrf.mxu0
        %v1079 = vadd.f32 %v1007, %v1078
        %v1080 = vpop.f32.mrf.mxu0
        %1081 = vdwg.mxu0
        %1082 = vst.msk [vmem:[%s457] sm:$0xff] %vm577, %v1079
        %s1083 = sand.u32 %s236, 1
        %s1084 = scalar_lea.sflag [#allocation8], %s1083
        %s1085 = sand.u32 %s236, 1
        %s1086 = smul.addr %s1085, 16
        %s1087 = scalar_lea.vmem [#allocation15], %s1086
        %s1088 = sand.u32 %s264, 1
        %s1089 = scalar_lea.sflag [#allocation17], %s1088
        %s1090 = sand.u32 %s264, 1
        %s1091 = smul.addr %s1090, 8
        %s1092 = scalar_lea.vmem [#allocation16], %s1091
        // Predicated region
        $region77: #{tpu_custom_call.1} parent=51 // pred_check
          %p1093 = pneg %p246
        $region78: #{tpu_custom_call.1} parent=51 // pred_check_branch
          %1095 = sbr.rel (%p1093) target = $region80
        $region79: #{tpu_custom_call.1} parent=51 // pred_region
          %s1097 = ssub.s32 256, 256
          %1098 = vsyncadd %s1084, %s1097
          %s1099 = smul.addr %s38, 2
          %s1100 = sadd.s32 %s39, %s1099
          %s1101 = smul.addr %s1100, 128
          %s1102 = scalar_lea.hbm %s8, %s1101
          %s1103 = sshll.u32 %s1087, 4
          %s1104 = int_to_ptr.vmem [resolvable:$true] %s1103
          %1109 = dma.vmem_to_hbm [thread:$0]  %s1104, 256, %s1102, %s1084, 128, 128, 8
        $region80: #{tpu_custom_call.1} parent=51 // pred_fallthru
          _
        // Predicated region
        $region81: #{tpu_custom_call.1} parent=51 // pred_check
          %p1110 = pneg %p274
        $region82: #{tpu_custom_call.1} parent=51 // pred_check_branch
          %1112 = sbr.rel (%p1110) target = $region84
        $region83: #{tpu_custom_call.1} parent=51 // pred_region
          %s1114 = ssub.s32 128, 128
          %1115 = vsyncadd %s1089, %s1114
          %s1116 = sadd.s32 %s39, %s38
          %s1117 = smul.addr %s1116, 128
          %s1118 = scalar_lea.hbm %s9, %s1117
          %s1120 = sshll.u32 %s1092, 4
          %s1121 = int_to_ptr.vmem [resolvable:$true] %s1120
          %1123 = dma.vmem_to_hbm [thread:$0]  %s1121, 128, %s1118, %s1089
        $region84: #{tpu_custom_call.1} parent=51 // pred_fallthru
          _
      $region52: #{tpu_custom_call.1} parent=5 // pred_fallthru
        _
      %p1124 = scmp.le.s32.totalorder 2, %s29
      // Predicated region
      $region85: #{tpu_custom_call.1} parent=5 // pred_check
        %p1125 = pneg %p1124
      $region86: #{tpu_custom_call.1} parent=5 // pred_check_branch
        %1127 = sbr.rel (%p1125) target = $region88
      $region87: #{tpu_custom_call.1} parent=5 // pred_region
        %s1128 = ssub.s32 %s29, 2
        // Predicated region
        $region89: #{tpu_custom_call.1} parent=87 // pred_check
          %p1129 = pneg %p252
        $region90: #{tpu_custom_call.1} parent=87 // pred_check_branch
          %1131 = sbr.rel (%p1129) target = $region92
        $region91: #{tpu_custom_call.1} parent=87 // pred_region
          %s1132 = sand.u32 %s237, 1
          %s1133 = scalar_lea.sflag [#allocation8], %s1132
          %s1134 = sand.u32 %s237, 1
          %s1135 = smul.addr %s1134, 16
          %s1136 = scalar_lea.vmem [#allocation15], %s1135
          %1137 = dma.done %s1133, 256
        $region92: #{tpu_custom_call.1} parent=87 // pred_fallthru
          _
        // Predicated region
        $region93: #{tpu_custom_call.1} parent=87 // pred_check
          %p1138 = pneg %p280
        $region94: #{tpu_custom_call.1} parent=87 // pred_check_branch
          %1140 = sbr.rel (%p1138) target = $region96
        $region95: #{tpu_custom_call.1} parent=87 // pred_region
          %s1141 = sand.u32 %s265, 1
          %s1142 = scalar_lea.sflag [#allocation17], %s1141
          %s1143 = sand.u32 %s265, 1
          %s1144 = smul.addr %s1143, 8
          %s1145 = scalar_lea.vmem [#allocation16], %s1144
          %1146 = dma.done %s1142, 128
        $region96: #{tpu_custom_call.1} parent=87 // pred_fallthru
          _
      $region88: #{tpu_custom_call.1} parent=5 // pred_fallthru
        _
    $region6: #{tpu_custom_call.1} parent=1 // loop_footer
      %s33 = sadd.s32 1, %s29
    $region7: #{tpu_custom_call.1} parent=1 // loop_footer_branch
      %28 = sbr.rel target = $region3
    $region8: #{tpu_custom_call.1} parent=1 // loop_exit
      _
    %1147 = vsyncpa [#allocation7], 1
    %s1148 = scalar_lea.sflag [#allocation7], 1
    %1149 = vsyncpa %s1148, 1
    %1150 = vsyncpa [#allocation10], 1
    %s1151 = scalar_lea.sflag [#allocation10], 1
    %1152 = vsyncpa %s1151, 1
    %1153 = vsyncpa [#allocation13], 1
    %1154 = vsyncpa [#allocation8], 1
    %s1155 = scalar_lea.sflag [#allocation8], 1
    %1156 = vsyncpa %s1155, 1
    %1157 = vsyncpa [#allocation17], 1
    %s1158 = scalar_lea.sflag [#allocation17], 1
    %1159 = vsyncpa %s1158, 1

</llo_original>
